<compile_context>
chip_gen: v5e
topology: v5e:2x2
jax: 0.10.0
libtpu: 0.0.40
codegen_flags: <defaults>
</compile_context>

<pallas_src>
import jax
import jax.numpy as jnp
from jax import lax
from jax.experimental import pallas as pl
from jax.experimental.pallas import tpu as pltpu

# ---------------------------------------------------------------------------
# Model hyper-parameters (FNN.__init__ defaults: fc_dims=[32,32], out_type='binary').
EMB_DIM = 8
NUM_FEATS = 64
NUM_FIELDS = 4
FC_DIMS = (32, 32)
D_IN = EMB_DIM * NUM_FIELDS          # 32
FC0, FC1 = FC_DIMS

# Batch tiling: batch maps to the *lane* axis inside the kernel.
MAX_TB = 4096          # big tiles for large B (amortize per-step pipeline overhead)
MIN_GRID_STEPS = 4     # keep >=4 grid steps so v7x's 2 TensorCores each get >=2

# Packed-parameter slab layout (single 128-lane-aligned f32 VMEM input).
#   cols [f*128, f*128+64)  : W1E_f = w1_f.T @ emb.T   (FC0, NUM_FEATS), f = 0..3
#   cols [512, 512+FC0)     : w2.T                     (FC1, FC0)
#   col  640 / 641 / 642    : b1 / b2 / wo columns     (32 each)
#   [0, 643]                : bo scalar
_SEG_W1E = 0
_SEG_W2 = NUM_FIELDS * 128           # 512
_SEG_B = 640
SLAB_ROWS = 32                       # = D_IN = FC0 = FC1 for this configuration
SLAB_COLS = 768

assert SLAB_ROWS == D_IN == FC0 == FC1


def fnn_fused_kernel(idx_ref, slab_ref, o_ref):
    """Fused gather+FC1 (via folded W1E), FC2, output layer for one batch tile."""
    idx = idx_ref[...]                                    # (NUM_FIELDS, TB) int32
    tb = idx.shape[1]

    # Single (NUM_FEATS, TB) iota reused for all fields (one-hot generation is the
    # dominant VALU work; never build a 256-row iota).
    row = lax.broadcasted_iota(jnp.int32, (NUM_FEATS, tb), 0)

    # Gather + first FC layer in one pass: 4 accumulating MXU dots of
    # W1E_f (FC0, NUM_FEATS) @ onehot_f (NUM_FEATS, TB).  Static Python loop
    # (NUM_FIELDS = 4) lets the scheduler overlap field f+1's compares with
    # field f's matmul; per-field streaming bounds live VMEM (v5e-friendly).
    h1_acc = None
    for f in range(NUM_FIELDS):
        onehot = (row == idx[f:f + 1, :]).astype(jnp.float32)        # (NUM_FEATS, TB)
        w1e_f = slab_ref[:, _SEG_W1E + f * 128:
                            _SEG_W1E + f * 128 + NUM_FEATS]          # (FC0, NUM_FEATS)
        contrib = jnp.dot(w1e_f, onehot, preferred_element_type=jnp.float32)
        h1_acc = contrib if h1_acc is None else h1_acc + contrib

    w2_t = slab_ref[:, _SEG_W2:_SEG_W2 + FC0]             # (FC1, FC0)
    b1_t = slab_ref[:, _SEG_B + 0:_SEG_B + 1]             # (FC0, 1)
    b2_t = slab_ref[:, _SEG_B + 1:_SEG_B + 2]             # (FC1, 1)
    wo_t = slab_ref[:, _SEG_B + 2:_SEG_B + 3]             # (FC1, 1)
    bo = slab_ref[0:1, _SEG_B + 3:_SEG_B + 4]             # (1, 1)

    h1 = jnp.maximum(h1_acc + b1_t, 0.0)                                      # (FC0, TB)
    h2 = jnp.maximum(jnp.dot(w2_t, h1, preferred_element_type=jnp.float32) + b2_t, 0.0)

    # Output layer: 32->1 projection on VPU (broadcast mul) + XLU sublane reduce,
    # producing a lane-dense (1, TB) row; then sigmoid.
    logits = jnp.sum(h2 * wo_t, axis=0, keepdims=True) + bo                   # (1, TB)
    o_ref[...] = jax.nn.sigmoid(logits)


def make_params(key):
    """Deterministic synthetic parameters (shapes implied by FNN.__init__)."""
    ks = jax.random.split(key, 7)
    scale = 0.1
    return {
        "emb": jax.random.normal(ks[0], (NUM_FEATS, EMB_DIM), jnp.float32) * scale,
        "w1":  jax.random.normal(ks[1], (D_IN, FC0), jnp.float32) * scale,
        "b1":  jax.random.normal(ks[2], (1, FC0), jnp.float32) * scale,
        "w2":  jax.random.normal(ks[3], (FC0, FC1), jnp.float32) * scale,
        "b2":  jax.random.normal(ks[4], (1, FC1), jnp.float32) * scale,
        "wo":  jax.random.normal(ks[5], (FC1, 1), jnp.float32) * scale,
        "bo":  jax.random.normal(ks[6], (1, 1), jnp.float32) * scale,
    }


def pack_params(params):
    """Pack weights into one f32 slab; fold embedding into the first FC layer.

    W1E_f[k, j] = sum_d w1[f*EMB_DIM + d, k] * emb[j, d], so that
    h1_pre^T = sum_f W1E_f @ onehot_f + b1^T  ==  (gather(emb) @ w1 + b1)^T.
    The fold is done elementwise-exactly in f32 (HIGHEST precision) so kernel
    numerics stay within 1e-5 of the pure-JAX reference.
    """
    emb = params["emb"].astype(jnp.float32)               # (NUM_FEATS, EMB_DIM)
    w1 = params["w1"].astype(jnp.float32)                 # (D_IN, FC0)
    slab = jnp.zeros((SLAB_ROWS, SLAB_COLS), jnp.float32)
    for f in range(NUM_FIELDS):
        w1_f = w1[f * EMB_DIM:(f + 1) * EMB_DIM, :]       # (EMB_DIM, FC0)
        w1e_f = jnp.einsum("dk,jd->kj", w1_f, emb,
                           precision=lax.Precision.HIGHEST)   # (FC0, NUM_FEATS)
        slab = slab.at[:, _SEG_W1E + f * 128:
                          _SEG_W1E + f * 128 + NUM_FEATS].set(w1e_f)
    slab = slab.at[:, _SEG_W2:_SEG_W2 + FC0].set(params["w2"].T)
    slab = slab.at[:, _SEG_B + 0].set(params["b1"].reshape(-1))
    slab = slab.at[:, _SEG_B + 1].set(params["b2"].reshape(-1))
    slab = slab.at[:, _SEG_B + 2].set(params["wo"].reshape(-1))
    slab = slab.at[0, _SEG_B + 3].set(params["bo"][0, 0])
    return slab


def _pick_batch_tile(batch):
    """TB = min(4096, round_up(cdiv(B, 4), 128)): big tiles for big B, but keep
    >=4 grid steps whenever possible so both v7x TensorCores get work."""
    tb = -(-batch // MIN_GRID_STEPS)
    tb = ((tb + 127) // 128) * 128
    return max(128, min(MAX_TB, tb))


def fnn_forward(feat_index, feat_value, params):
    """FNN forward (deep branch). Gather + MLP + output layer fused in one kernel."""
    del feat_value  # unused in the deep/FNN branch, exactly like the reference
    B = feat_index.shape[0]
    tb = _pick_batch_tile(B)
    n_tiles = pl.cdiv(B, tb)

    # Field-major indices, no batch padding: ragged tails are handled by Pallas
    # partial edge blocks (garbage tail-lane indices yield finite values in lanes
    # that are never written back).
    # TODO(synk): a producer that already emits field-major (NUM_FIELDS, B) (ideally
    # int16) indices could feed the kernel directly and skip this transpose pass.
    idx_t = feat_index.astype(jnp.int32).T                 # (NUM_FIELDS, B)
    slab = pack_params(params)

    out = pl.pallas_call(
        fnn_fused_kernel,
        out_shape=jax.ShapeDtypeStruct((1, B), jnp.float32),
        grid_spec=pltpu.PrefetchScalarGridSpec(
            num_scalar_prefetch=0,
            grid=(n_tiles,),
            in_specs=[
                pl.BlockSpec((NUM_FIELDS, tb), lambda i: (0, i)),        # indices
                pl.BlockSpec((SLAB_ROWS, SLAB_COLS), lambda i: (0, 0)),  # packed params
            ],
            out_specs=pl.BlockSpec((1, tb), lambda i: (0, i)),           # lane-dense out
        ),
        compiler_params=pltpu.CompilerParams(
            dimension_semantics=("parallel",),
        ),
    )(idx_t, slab)

    return out.reshape(B, 1)


def fnn_forward_ref(feat_index, feat_value, params):
    """Pure-JAX reference for correctness checking."""
    del feat_value
    emb = jnp.take(params["emb"], feat_index, axis=0)
    x = emb.reshape(-1, D_IN).astype(jnp.float32)
    h1 = jnp.maximum(x @ params["w1"] + params["b1"], 0.0)
    h2 = jnp.maximum(h1 @ params["w2"] + params["b2"], 0.0)
    return jax.nn.sigmoid(h2 @ params["wo"] + params["bo"])


if __name__ == "__main__":
    BATCH = 2000  # non-multiple of the 512-wide tile: exercises ragged edge blocks

    key = jax.random.PRNGKey(0)
    k_param, k_idx, k_val = jax.random.split(key, 3)

    params = make_params(k_param)
    feat_index = jax.random.randint(k_idx, (BATCH, NUM_FIELDS), 0, NUM_FEATS,
                                    dtype=jnp.int32)
    feat_value = jax.random.uniform(k_val, (BATCH, NUM_FIELDS), jnp.float32)

    y = jax.jit(fnn_forward)(feat_index, feat_value, params)
    y = jax.block_until_ready(y)

    y_ref = fnn_forward_ref(feat_index, feat_value, params)
    assert y.shape == (BATCH, 1), y.shape
    assert jnp.allclose(y, y_ref, atol=1e-5, rtol=1e-5), (
        jnp.max(jnp.abs(y - y_ref)))

    print("KERNEL_OK")
</pallas_src>

<mosaic_0001>
module attributes {stable_mosaic.version = 11 : i64} {
  func.func @fnn_fused_kernel(%arg0: i32, %arg1: memref<4x512xi32, #tpu.memory_space<vmem>>, %arg2: memref<32x768xf32, #tpu.memory_space<vmem>>, %arg3: memref<1x512xf32, #tpu.memory_space<vmem>>) attributes {dimension_semantics = [#tpu.dimension_semantics<parallel>], iteration_bounds = array<i64: 4>, scalar_prefetch = 0 : i64, scratch_operands = 0 : i64, tpu.core_type = #tpu.core_type<tc>, window_params = [{transform_indices = @transform_0, window_bounds = array<i64: 4, 512>}, {pipeline_mode = #tpu.pipeline_mode<synchronous>, transform_indices = @transform_1, window_bounds = array<i64: 32, 768>}, {transform_indices = @transform_2, window_bounds = array<i64: 1, 512>}]} {
    %c0 = arith.constant 0 : index
    %c0_0 = arith.constant 0 : index
    %0 = vector.load %arg1[%c0, %c0_0] : memref<4x512xi32, #tpu.memory_space<vmem>>, vector<4x512xi32>
    %1 = tpu.iota {dimensions = array<i32: 0>} : vector<64x512xi32>
    %2 = vector.extract_strided_slice %0 {offsets = [0, 0], sizes = [1, 512], strides = [1, 1]} : vector<4x512xi32> to vector<1x512xi32>
    %3 = vector.broadcast %2 : vector<1x512xi32> to vector<64x512xi32>
    %4 = arith.cmpi eq, %1, %3 : vector<64x512xi32>
    %5 = arith.extui %4 : vector<64x512xi1> to vector<64x512xi32>
    %6 = arith.sitofp %5 : vector<64x512xi32> to vector<64x512xf32>
    %c0_1 = arith.constant 0 : index
    %c0_2 = arith.constant 0 : index
    %7 = vector.load %arg2[%c0_1, %c0_2] : memref<32x768xf32, #tpu.memory_space<vmem>>, vector<32x64xf32>
    %cst = arith.constant dense<0.000000e+00> : vector<32x512xf32>
    %8 = tpu.matmul %7, %6, %cst {dimension_numbers = #tpu.dot_dimension_numbers<[1], [0], [0], [1], [0, 0, 1, 1], [], []>} : vector<32x64xf32>, vector<64x512xf32>, vector<32x512xf32> -> vector<32x512xf32>
    %9 = vector.extract_strided_slice %0 {offsets = [1, 0], sizes = [1, 512], strides = [1, 1]} : vector<4x512xi32> to vector<1x512xi32>
    %10 = vector.broadcast %9 : vector<1x512xi32> to vector<64x512xi32>
    %11 = arith.cmpi eq, %1, %10 : vector<64x512xi32>
    %12 = arith.extui %11 : vector<64x512xi1> to vector<64x512xi32>
    %13 = arith.sitofp %12 : vector<64x512xi32> to vector<64x512xf32>
    %c0_3 = arith.constant 0 : index
    %c128 = arith.constant 128 : index
    %14 = vector.load %arg2[%c0_3, %c128] : memref<32x768xf32, #tpu.memory_space<vmem>>, vector<32x64xf32>
    %cst_4 = arith.constant dense<0.000000e+00> : vector<32x512xf32>
    %15 = tpu.matmul %14, %13, %cst_4 {dimension_numbers = #tpu.dot_dimension_numbers<[1], [0], [0], [1], [0, 0, 1, 1], [], []>} : vector<32x64xf32>, vector<64x512xf32>, vector<32x512xf32> -> vector<32x512xf32>
    %16 = arith.addf %8, %15 : vector<32x512xf32>
    %17 = vector.extract_strided_slice %0 {offsets = [2, 0], sizes = [1, 512], strides = [1, 1]} : vector<4x512xi32> to vector<1x512xi32>
    %18 = vector.broadcast %17 : vector<1x512xi32> to vector<64x512xi32>
    %19 = arith.cmpi eq, %1, %18 : vector<64x512xi32>
    %20 = arith.extui %19 : vector<64x512xi1> to vector<64x512xi32>
    %21 = arith.sitofp %20 : vector<64x512xi32> to vector<64x512xf32>
    %c0_5 = arith.constant 0 : index
    %c256 = arith.constant 256 : index
    %22 = vector.load %arg2[%c0_5, %c256] : memref<32x768xf32, #tpu.memory_space<vmem>>, vector<32x64xf32>
    %cst_6 = arith.constant dense<0.000000e+00> : vector<32x512xf32>
    %23 = tpu.matmul %22, %21, %cst_6 {dimension_numbers = #tpu.dot_dimension_numbers<[1], [0], [0], [1], [0, 0, 1, 1], [], []>} : vector<32x64xf32>, vector<64x512xf32>, vector<32x512xf32> -> vector<32x512xf32>
    %24 = arith.addf %16, %23 : vector<32x512xf32>
    %25 = vector.extract_strided_slice %0 {offsets = [3, 0], sizes = [1, 512], strides = [1, 1]} : vector<4x512xi32> to vector<1x512xi32>
    %26 = vector.broadcast %25 : vector<1x512xi32> to vector<64x512xi32>
    %27 = arith.cmpi eq, %1, %26 : vector<64x512xi32>
    %28 = arith.extui %27 : vector<64x512xi1> to vector<64x512xi32>
    %29 = arith.sitofp %28 : vector<64x512xi32> to vector<64x512xf32>
    %c0_7 = arith.constant 0 : index
    %c384 = arith.constant 384 : index
    %30 = vector.load %arg2[%c0_7, %c384] : memref<32x768xf32, #tpu.memory_space<vmem>>, vector<32x64xf32>
    %cst_8 = arith.constant dense<0.000000e+00> : vector<32x512xf32>
    %31 = tpu.matmul %30, %29, %cst_8 {dimension_numbers = #tpu.dot_dimension_numbers<[1], [0], [0], [1], [0, 0, 1, 1], [], []>} : vector<32x64xf32>, vector<64x512xf32>, vector<32x512xf32> -> vector<32x512xf32>
    %32 = arith.addf %24, %31 : vector<32x512xf32>
    %c0_9 = arith.constant 0 : index
    %c512 = arith.constant 512 : index
    %33 = vector.load %arg2[%c0_9, %c512] : memref<32x768xf32, #tpu.memory_space<vmem>>, vector<32x32xf32>
    %c0_10 = arith.constant 0 : index
    %c640 = arith.constant 640 : index
    %34 = vector.load %arg2[%c0_10, %c640] : memref<32x768xf32, #tpu.memory_space<vmem>>, vector<32x1xf32>
    %c0_11 = arith.constant 0 : index
    %c641 = arith.constant 641 : index
    %35 = vector.load %arg2[%c0_11, %c641] : memref<32x768xf32, #tpu.memory_space<vmem>>, vector<32x1xf32>
    %c0_12 = arith.constant 0 : index
    %c642 = arith.constant 642 : index
    %36 = vector.load %arg2[%c0_12, %c642] : memref<32x768xf32, #tpu.memory_space<vmem>>, vector<32x1xf32>
    %c0_13 = arith.constant 0 : index
    %c643 = arith.constant 643 : index
    %37 = vector.load %arg2[%c0_13, %c643] : memref<32x768xf32, #tpu.memory_space<vmem>>, vector<1x1xf32>
    %38 = vector.broadcast %34 : vector<32x1xf32> to vector<32x512xf32>
    %39 = arith.addf %32, %38 : vector<32x512xf32>
    %cst_14 = arith.constant 0.000000e+00 : f32
    %40 = vector.broadcast %cst_14 : f32 to vector<32x512xf32>
    %41 = arith.maximumf %39, %40 : vector<32x512xf32>
    %cst_15 = arith.constant dense<0.000000e+00> : vector<32x512xf32>
    %42 = tpu.matmul %33, %41, %cst_15 {dimension_numbers = #tpu.dot_dimension_numbers<[1], [0], [0], [1], [0, 0, 1, 1], [], []>} : vector<32x32xf32>, vector<32x512xf32>, vector<32x512xf32> -> vector<32x512xf32>
    %43 = vector.broadcast %35 : vector<32x1xf32> to vector<32x512xf32>
    %44 = arith.addf %42, %43 : vector<32x512xf32>
    %cst_16 = arith.constant 0.000000e+00 : f32
    %45 = vector.broadcast %cst_16 : f32 to vector<32x512xf32>
    %46 = arith.maximumf %44, %45 : vector<32x512xf32>
    %47 = vector.broadcast %36 : vector<32x1xf32> to vector<32x512xf32>
    %48 = arith.mulf %46, %47 : vector<32x512xf32>
    %cst_17 = arith.constant dense<0.000000e+00> : vector<512xf32>
    %49 = vector.multi_reduction <add>, %48, %cst_17 [0] : vector<32x512xf32> to vector<512xf32>
    %50 = vector.shape_cast %49 : vector<512xf32> to vector<1x512xf32>
    %51 = vector.broadcast %37 : vector<1x1xf32> to vector<1x512xf32>
    %52 = arith.addf %50, %51 : vector<1x512xf32>
    %53 = arith.negf %52 : vector<1x512xf32>
    %54 = math.exp %53 : vector<1x512xf32>
    %cst_18 = arith.constant 1.000000e+00 : f32
    %55 = vector.broadcast %cst_18 : f32 to vector<1x512xf32>
    %56 = arith.addf %55, %54 : vector<1x512xf32>
    %57 = arith.divf %55, %56 : vector<1x512xf32>
    %c0_19 = arith.constant 0 : index
    %c0_20 = arith.constant 0 : index
    %58 = vector.load %arg3[%c0_19, %c0_20] : memref<1x512xf32, #tpu.memory_space<vmem>>, vector<1x512xf32>
    tpu.vector_store %arg3[%c0_19, %c0_20], %57 {strides = array<i32>} : memref<1x512xf32, #tpu.memory_space<vmem>>, vector<1x512xf32>,
    return
  }
  func.func @transform_0(%arg0: i32) -> (i32, i32) {
    %c0_i32 = arith.constant 0 : i32
    %c0_i32_0 = arith.constant 0 : i32
    return %c0_i32, %arg0 : i32, i32
  }
  func.func @transform_1(%arg0: i32) -> (i32, i32) {
    %c0_i32 = arith.constant 0 : i32
    %c0_i32_0 = arith.constant 0 : i32
    %c0_i32_1 = arith.constant 0 : i32
    return %c0_i32, %c0_i32_0 : i32, i32
  }
  func.func @transform_2(%arg0: i32) -> (i32, i32) {
    %c0_i32 = arith.constant 0 : i32
    %c0_i32_0 = arith.constant 0 : i32
    return %c0_i32, %arg0 : i32, i32
  }
}

</mosaic_0001>

<llo_original>
// kernel: fnn_forward.1
$region0: #{fnn_forward.1}
  #allocation0 [shape = 'u32[]', space=smem, size = 0x4, offset = 0x4, fixed_abs, tag = 'smem constant byte address 0x4 - core index']
  #allocation1 [shape = 'u32[72,128]{1,0:T(1,128)}', space=vmem, size = 0x9000, scoped, tag = 'internal scratch']
  %s0 = inlined_call_operand.vmem [shape: s32[4,2000], index: 0, kind: input, shape index: {}]
  %s1 = inlined_call_operand.vmem [shape: f32[32,768], index: 1, kind: input, shape index: {}]
  %s2 = inlined_call_operand.hbm [shape: f32[1,2000], index: 2, kind: output, shape index: {}]
  %s3 = sld [smem:[#allocation0]]
  $region41: #{fnn_forward.1} parent=0
    _
  %s5 = ssub.s32 1, %s3
  %s6 = scalar_select 0, %s5, %s3
  $region1: #{fnn_forward.1} parent=0
    #allocation2 [shape = 'u8[4096]{0}', space=vmem, size = 0x1000, scoped, tag = 'output window, operand 0']
    #allocation3 [shape = 's32[2]{0}', space=sflag, size = 0x8, scoped, tag = 'scoped memory for fnn_forward.1']
    %7 = vsyncpa [#allocation3], 0
    %s8 = scalar_lea.sflag [#allocation3], 1
    %9 = vsyncpa %s8, 0
    loop: start=0, step=1, limit=6
    $region2: #{fnn_forward.1} parent=1 // loop_pre_header
      _
    $region3: #{fnn_forward.1} parent=1 // loop_header
      %s11 = sphi 0, %s15
      %p12 = scmp.ge.s32.totalorder %s11, 6
      %s21 = sphi 0, %s23
      %s24 = sphi 0, %s21
      %s25 = sphi 0, %s24
      %s41 = sphi 0, %s25
      %s45 = sphi 0, %s45
      %s47 = sphi 0, %s45
      %s48 = sphi 0, %s47
      %s62 = sphi 0, %s48
      %s68 = sphi 0, %s70
      %s71 = sphi 0, %s68
      %s72 = sphi 0, %s71
      %s88 = sphi 0, %s72
    $region4: #{fnn_forward.1} parent=1 // loop_header_branch
      %14 = sbr.rel (%p12) target = $region8
    $region5: #{fnn_forward.1} parent=1 // loop_body
      %s16 = ssub.s32 %s11, 1
      %s17 = ssub.s32 %s11, 2
      %s18 = sadd.s32 %s11, 1
      %s19 = ssub.s32 %s11, %s18
      %p20 = scmp.eq.s32.totalorder %s19, 0
      %s22 = sadd.s32 %s21, 1
      %s23 = scalar_select %p20, %s21, %s22
      %p26 = pneg %p20
      %p27 = scmp.eq.s32.totalorder %s11, 3
      %p28 = por %p26, %p27
      %p29 = scmp.ne.s32.totalorder %s21, %s24
      %p30 = scmp.eq.s32.totalorder %s11, 0
      %p31 = por %p29, %p30
      %p32 = scmp.ne.s32.totalorder %s21, %s24
      %p33 = scmp.eq.s32.totalorder %s16, 3
      %p34 = por %p32, %p33
      %p35 = scmp.ne.s32.totalorder %s24, %s25
      %p36 = scmp.eq.s32.totalorder %s16, 0
      %p37 = por %p35, %p36
      %p38 = scmp.ne.s32.totalorder %s24, %s25
      %p39 = scmp.eq.s32.totalorder %s17, 3
      %p40 = por %p38, %p39
      %p42 = scmp.ne.s32.totalorder %s25, %s41
      %p43 = scmp.eq.s32.totalorder %s17, 0
      %p44 = por %p42, %p43
      %s46 = sadd.s32 %s45, 1
      %p49 = scmp.eq.s32.totalorder %s11, 3
      %p50 = scmp.ne.s32.totalorder %s45, %s47
      %p51 = scmp.eq.s32.totalorder %s11, 0
      %p52 = por %p50, %p51
      %p53 = scmp.ne.s32.totalorder %s45, %s47
      %p54 = scmp.eq.s32.totalorder %s16, 3
      %p55 = por %p53, %p54
      %p56 = scmp.ne.s32.totalorder %s47, %s48
      %p57 = scmp.eq.s32.totalorder %s16, 0
      %p58 = por %p56, %p57
      %p59 = scmp.ne.s32.totalorder %s47, %s48
      %p60 = scmp.eq.s32.totalorder %s17, 3
      %p61 = por %p59, %p60
      %p63 = scmp.ne.s32.totalorder %s48, %s62
      %p64 = scmp.eq.s32.totalorder %s17, 0
      %p65 = por %p63, %p64
      %s66 = ssub.s32 %s11, %s18
      %p67 = scmp.eq.s32.totalorder %s66, 0
      %s69 = sadd.s32 %s68, 1
      %s70 = scalar_select %p67, %s68, %s69
      %p73 = pneg %p67
      %p74 = scmp.eq.s32.totalorder %s11, 3
      %p75 = por %p73, %p74
      %p76 = scmp.ne.s32.totalorder %s68, %s71
      %p77 = scmp.eq.s32.totalorder %s11, 0
      %p78 = por %p76, %p77
      %p79 = scmp.ne.s32.totalorder %s68, %s71
      %p80 = scmp.eq.s32.totalorder %s16, 3
      %p81 = por %p79, %p80
      %p82 = scmp.ne.s32.totalorder %s71, %s72
      %p83 = scmp.eq.s32.totalorder %s16, 0
      %p84 = por %p82, %p83
      %p85 = scmp.ne.s32.totalorder %s71, %s72
      %p86 = scmp.eq.s32.totalorder %s17, 3
      %p87 = por %p85, %p86
      %p89 = scmp.ne.s32.totalorder %s72, %s88
      %p90 = scmp.eq.s32.totalorder %s17, 0
      %p91 = por %p89, %p90
      %p92 = scmp.le.s32.totalorder 1, %s11
      %p93 = scmp.lt.s32.totalorder %s11, 5
      %p94 = pnand %p92, %p93
      %p95 = pneg %p94
      // Predicated region
      $region9: #{fnn_forward.1} parent=5 // pred_check
        _
      $region10: #{fnn_forward.1} parent=5 // pred_check_branch
        %97 = sbr.rel (%p94) target = $region12
      $region11: #{fnn_forward.1} parent=5 // pred_region
        %s98 = ssub.s32 %s11, 1
        // Predicated region
        $region13: #{fnn_forward.1} parent=11 // pred_check
          %p99 = pneg %p58
        $region14: #{fnn_forward.1} parent=11 // pred_check_branch
          %101 = sbr.rel (%p99) target = $region16
        $region15: #{fnn_forward.1} parent=11 // pred_region
          _
        $region16: #{fnn_forward.1} parent=11 // pred_fallthru
          _
      $region12: #{fnn_forward.1} parent=5 // pred_fallthru
        _
      %p102 = scmp.lt.s32.totalorder %s11, 4
      // Predicated region
      $region17: #{fnn_forward.1} parent=5 // pred_check
        %p103 = pneg %p102
      $region18: #{fnn_forward.1} parent=5 // pred_check_branch
        %105 = sbr.rel (%p103) target = $region20
      $region19: #{fnn_forward.1} parent=5 // pred_region
        // Predicated region
        $region21: #{fnn_forward.1} parent=19 // pred_check
          %p106 = pneg %p31
        $region22: #{fnn_forward.1} parent=19 // pred_check_branch
          %108 = sbr.rel (%p106) target = $region24
        $region23: #{fnn_forward.1} parent=19 // pred_region
          %s109 = smul.u32 4, %s11
          %p110 = scmp.lt.s32.totalorder %s109, 15
          %s111 = scalar_select %p110, %s109, 15
          %s112 = smul.addr %s111, 4
          %s113 = scalar_lea.vmem %s0, %s112
          %s114 = smul.u32 4, %s11
        $region24: #{fnn_forward.1} parent=19 // pred_fallthru
          _
      $region20: #{fnn_forward.1} parent=5 // pred_fallthru
        _
      %p115 = scmp.le.s32.totalorder 1, %s11
      %p116 = scmp.lt.s32.totalorder %s11, 5
      %p117 = pnand %p115, %p116
      %p118 = pneg %p117
      // Predicated region
      $region25: #{fnn_forward.1} parent=5 // pred_check
        _
      $region26: #{fnn_forward.1} parent=5 // pred_check_branch
        %120 = sbr.rel (%p117) target = $region28
      $region27: #{fnn_forward.1} parent=5 // pred_region
        %s121 = ssub.s32 %s11, 1
        %s122 = smul.u32 4, %s16
        %p123 = scmp.lt.s32.totalorder %s122, 15
        %s124 = scalar_select %p123, %s122, 15
        %s125 = smul.addr %s124, 4
        %s126 = scalar_lea.vmem %s0, %s125
        %p127 = pneg %p37
        %p128 = pneg %p34
        %p129 = pneg %p58
        %p130 = pneg %p55
        %p131 = pneg %p84
        %p132 = pneg %p81
        %s133 = sand.u32 %s71, 1
        %s134 = scalar_lea.sflag [#allocation3], %s133
        %s135 = sand.u32 %s71, 1
        %s136 = smul.addr %s135, 4
        %s137 = scalar_lea.vmem [#allocation2], %s136
        %s138 = smul.u32 4, %s16
        %p139 = scmp.lt.s32.totalorder %s138, 15
        %s140 = scalar_select %p139, %s138, 15
        %s141 = smul.addr %s140, 4
        %s142 = scalar_lea.vmem %s0, %s141
        %s143 = smul.u32 4, %s16
        %s144 = smul.u32 4, %s16
        %v145 = vld [vmem:[%s142] sm:$0xff]
        %v146 = vld [vmem:[%s142 + $0x8] sm:$0xff]
        %v147 = vlaneseq
        %v148 = vshrl.u32 %v147, 7
        %v149 = vadd.s32 %v148, 8
        %v150 = vadd.s32 %v148, 16
        %v151 = vadd.s32 %v148, 24
        %v152 = vadd.s32 %v148, 32
        %v153 = vadd.s32 %v148, 40
        %v154 = vadd.s32 %v148, 48
        %v155 = vadd.s32 %v148, 56
        %v156 = vperm.slane %v145, 0
        %v157 = vperm.slane %v145, 4
        %v158 = vperm.slane %v146, 0
        %v159 = vperm.slane %v146, 4
        %v160 = vperm.slane %v156, 0
        %v161 = vperm.slane %v157, 0
        %v162 = vperm.slane %v158, 0
        %v163 = vperm.slane %v159, 0
        %vm164 = vcmp.eq.s32.totalorder %v148, %v160
        %vm165 = vcmp.eq.s32.totalorder %v148, %v161
        %vm166 = vcmp.eq.s32.totalorder %v148, %v162
        %vm167 = vcmp.eq.s32.totalorder %v148, %v163
        %vm168 = vcmp.eq.s32.totalorder %v149, %v160
        %vm169 = vcmp.eq.s32.totalorder %v149, %v161
        %vm170 = vcmp.eq.s32.totalorder %v149, %v162
        %vm171 = vcmp.eq.s32.totalorder %v149, %v163
        %vm172 = vcmp.eq.s32.totalorder %v150, %v160
        %vm173 = vcmp.eq.s32.totalorder %v150, %v161
        %vm174 = vcmp.eq.s32.totalorder %v150, %v162
        %vm175 = vcmp.eq.s32.totalorder %v150, %v163
        %vm176 = vcmp.eq.s32.totalorder %v151, %v160
        %vm177 = vcmp.eq.s32.totalorder %v151, %v161
        %vm178 = vcmp.eq.s32.totalorder %v151, %v162
        %vm179 = vcmp.eq.s32.totalorder %v151, %v163
        %vm180 = vcmp.eq.s32.totalorder %v152, %v160
        %vm181 = vcmp.eq.s32.totalorder %v152, %v161
        %vm182 = vcmp.eq.s32.totalorder %v152, %v162
        %vm183 = vcmp.eq.s32.totalorder %v152, %v163
        %vm184 = vcmp.eq.s32.totalorder %v153, %v160
        %vm185 = vcmp.eq.s32.totalorder %v153, %v161
        %vm186 = vcmp.eq.s32.totalorder %v153, %v162
        %vm187 = vcmp.eq.s32.totalorder %v153, %v163
        %vm188 = vcmp.eq.s32.totalorder %v154, %v160
        %vm189 = vcmp.eq.s32.totalorder %v154, %v161
        %vm190 = vcmp.eq.s32.totalorder %v154, %v162
        %vm191 = vcmp.eq.s32.totalorder %v154, %v163
        %vm192 = vcmp.eq.s32.totalorder %v155, %v160
        %vm193 = vcmp.eq.s32.totalorder %v155, %v161
        %vm194 = vcmp.eq.s32.totalorder %v155, %v162
        %vm195 = vcmp.eq.s32.totalorder %v155, %v163
        %v196 = vsel %vm164, 1, 0
        %v197 = vsel %vm165, 1, 0
        %v198 = vsel %vm166, 1, 0
        %v199 = vsel %vm167, 1, 0
        %v200 = vsel %vm168, 1, 0
        %v201 = vsel %vm169, 1, 0
        %v202 = vsel %vm170, 1, 0
        %v203 = vsel %vm171, 1, 0
        %v204 = vsel %vm172, 1, 0
        %v205 = vsel %vm173, 1, 0
        %v206 = vsel %vm174, 1, 0
        %v207 = vsel %vm175, 1, 0
        %v208 = vsel %vm176, 1, 0
        %v209 = vsel %vm177, 1, 0
        %v210 = vsel %vm178, 1, 0
        %v211 = vsel %vm179, 1, 0
        %v212 = vsel %vm180, 1, 0
        %v213 = vsel %vm181, 1, 0
        %v214 = vsel %vm182, 1, 0
        %v215 = vsel %vm183, 1, 0
        %v216 = vsel %vm184, 1, 0
        %v217 = vsel %vm185, 1, 0
        %v218 = vsel %vm186, 1, 0
        %v219 = vsel %vm187, 1, 0
        %v220 = vsel %vm188, 1, 0
        %v221 = vsel %vm189, 1, 0
        %v222 = vsel %vm190, 1, 0
        %v223 = vsel %vm191, 1, 0
        %v224 = vsel %vm192, 1, 0
        %v225 = vsel %vm193, 1, 0
        %v226 = vsel %vm194, 1, 0
        %v227 = vsel %vm195, 1, 0
        %v228 = vcvt.s32.f32 %v196
        %v229 = vcvt.s32.f32 %v197
        %v230 = vcvt.s32.f32 %v198
        %v231 = vcvt.s32.f32 %v199
        %v232 = vcvt.s32.f32 %v200
        %v233 = vcvt.s32.f32 %v201
        %v234 = vcvt.s32.f32 %v202
        %v235 = vcvt.s32.f32 %v203
        %v236 = vcvt.s32.f32 %v204
        %v237 = vcvt.s32.f32 %v205
        %v238 = vcvt.s32.f32 %v206
        %v239 = vcvt.s32.f32 %v207
        %v240 = vcvt.s32.f32 %v208
        %v241 = vcvt.s32.f32 %v209
        %v242 = vcvt.s32.f32 %v210
        %v243 = vcvt.s32.f32 %v211
        %v244 = vcvt.s32.f32 %v212
        %v245 = vcvt.s32.f32 %v213
        %v246 = vcvt.s32.f32 %v214
        %v247 = vcvt.s32.f32 %v215
        %v248 = vcvt.s32.f32 %v216
        %v249 = vcvt.s32.f32 %v217
        %v250 = vcvt.s32.f32 %v218
        %v251 = vcvt.s32.f32 %v219
        %v252 = vcvt.s32.f32 %v220
        %v253 = vcvt.s32.f32 %v221
        %v254 = vcvt.s32.f32 %v222
        %v255 = vcvt.s32.f32 %v223
        %v256 = vcvt.s32.f32 %v224
        %v257 = vcvt.s32.f32 %v225
        %v258 = vcvt.s32.f32 %v226
        %v259 = vcvt.s32.f32 %v227
        %v260 = vld [vmem:[%s1] sm:$0xff]
        %v261 = vld [vmem:[%s1 + $0x30] sm:$0xff]
        %v262 = vld [vmem:[%s1 + $0x60] sm:$0xff]
        %v263 = vld [vmem:[%s1 + $0x90] sm:$0xff]
        %v264 = vperm.slane %v145, 1
        %v265 = vperm.slane %v145, 5
        %v266 = vperm.slane %v146, 1
        %v267 = vperm.slane %v146, 5
        %v268 = vperm.slane %v264, 1
        %v269 = vperm.slane %v265, 1
        %v270 = vperm.slane %v266, 1
        %v271 = vperm.slane %v267, 1
        %vm272 = vcmp.eq.s32.totalorder %v148, %v268
        %vm273 = vcmp.eq.s32.totalorder %v148, %v269
        %vm274 = vcmp.eq.s32.totalorder %v148, %v270
        %vm275 = vcmp.eq.s32.totalorder %v148, %v271
        %vm276 = vcmp.eq.s32.totalorder %v149, %v268
        %vm277 = vcmp.eq.s32.totalorder %v149, %v269
        %vm278 = vcmp.eq.s32.totalorder %v149, %v270
        %vm279 = vcmp.eq.s32.totalorder %v149, %v271
        %vm280 = vcmp.eq.s32.totalorder %v150, %v268
        %vm281 = vcmp.eq.s32.totalorder %v150, %v269
        %vm282 = vcmp.eq.s32.totalorder %v150, %v270
        %vm283 = vcmp.eq.s32.totalorder %v150, %v271
        %vm284 = vcmp.eq.s32.totalorder %v151, %v268
        %vm285 = vcmp.eq.s32.totalorder %v151, %v269
        %vm286 = vcmp.eq.s32.totalorder %v151, %v270
        %vm287 = vcmp.eq.s32.totalorder %v151, %v271
        %vm288 = vcmp.eq.s32.totalorder %v152, %v268
        %vm289 = vcmp.eq.s32.totalorder %v152, %v269
        %vm290 = vcmp.eq.s32.totalorder %v152, %v270
        %vm291 = vcmp.eq.s32.totalorder %v152, %v271
        %vm292 = vcmp.eq.s32.totalorder %v153, %v268
        %vm293 = vcmp.eq.s32.totalorder %v153, %v269
        %vm294 = vcmp.eq.s32.totalorder %v153, %v270
        %vm295 = vcmp.eq.s32.totalorder %v153, %v271
        %vm296 = vcmp.eq.s32.totalorder %v154, %v268
        %vm297 = vcmp.eq.s32.totalorder %v154, %v269
        %vm298 = vcmp.eq.s32.totalorder %v154, %v270
        %vm299 = vcmp.eq.s32.totalorder %v154, %v271
        %vm300 = vcmp.eq.s32.totalorder %v155, %v268
        %vm301 = vcmp.eq.s32.totalorder %v155, %v269
        %vm302 = vcmp.eq.s32.totalorder %v155, %v270
        %vm303 = vcmp.eq.s32.totalorder %v155, %v271
        %v304 = vsel %vm272, 1, 0
        %v305 = vsel %vm273, 1, 0
        %v306 = vsel %vm274, 1, 0
        %v307 = vsel %vm275, 1, 0
        %v308 = vsel %vm276, 1, 0
        %v309 = vsel %vm277, 1, 0
        %v310 = vsel %vm278, 1, 0
        %v311 = vsel %vm279, 1, 0
        %v312 = vsel %vm280, 1, 0
        %v313 = vsel %vm281, 1, 0
        %v314 = vsel %vm282, 1, 0
        %v315 = vsel %vm283, 1, 0
        %v316 = vsel %vm284, 1, 0
        %v317 = vsel %vm285, 1, 0
        %v318 = vsel %vm286, 1, 0
        %v319 = vsel %vm287, 1, 0
        %v320 = vsel %vm288, 1, 0
        %v321 = vsel %vm289, 1, 0
        %v322 = vsel %vm290, 1, 0
        %v323 = vsel %vm291, 1, 0
        %v324 = vsel %vm292, 1, 0
        %v325 = vsel %vm293, 1, 0
        %v326 = vsel %vm294, 1, 0
        %v327 = vsel %vm295, 1, 0
        %v328 = vsel %vm296, 1, 0
        %v329 = vsel %vm297, 1, 0
        %v330 = vsel %vm298, 1, 0
        %v331 = vsel %vm299, 1, 0
        %v332 = vsel %vm300, 1, 0
        %v333 = vsel %vm301, 1, 0
        %v334 = vsel %vm302, 1, 0
        %v335 = vsel %vm303, 1, 0
        %v336 = vcvt.s32.f32 %v304
        %v337 = vcvt.s32.f32 %v305
        %v338 = vcvt.s32.f32 %v306
        %v339 = vcvt.s32.f32 %v307
        %v340 = vcvt.s32.f32 %v308
        %v341 = vcvt.s32.f32 %v309
        %v342 = vcvt.s32.f32 %v310
        %v343 = vcvt.s32.f32 %v311
        %v344 = vcvt.s32.f32 %v312
        %v345 = vcvt.s32.f32 %v313
        %v346 = vcvt.s32.f32 %v314
        %v347 = vcvt.s32.f32 %v315
        %v348 = vcvt.s32.f32 %v316
        %v349 = vcvt.s32.f32 %v317
        %v350 = vcvt.s32.f32 %v318
        %v351 = vcvt.s32.f32 %v319
        %v352 = vcvt.s32.f32 %v320
        %v353 = vcvt.s32.f32 %v321
        %v354 = vcvt.s32.f32 %v322
        %v355 = vcvt.s32.f32 %v323
        %v356 = vcvt.s32.f32 %v324
        %v357 = vcvt.s32.f32 %v325
        %v358 = vcvt.s32.f32 %v326
        %v359 = vcvt.s32.f32 %v327
        %v360 = vcvt.s32.f32 %v328
        %v361 = vcvt.s32.f32 %v329
        %v362 = vcvt.s32.f32 %v330
        %v363 = vcvt.s32.f32 %v331
        %v364 = vcvt.s32.f32 %v332
        %v365 = vcvt.s32.f32 %v333
        %v366 = vcvt.s32.f32 %v334
        %v367 = vcvt.s32.f32 %v335
        %v368 = vld [vmem:[%s1 + $0x8] sm:$0xff]
        %v369 = vld [vmem:[%s1 + $0x38] sm:$0xff]
        %v370 = vld [vmem:[%s1 + $0x68] sm:$0xff]
        %v371 = vld [vmem:[%s1 + $0x98] sm:$0xff]
        %vm372 = vcmask 523264
        %v374 = vsel %vm372, %v368, 0
        %v377 = vsel %vm372, %v369, 0
        %v380 = vsel %vm372, %v370, 0
        %v383 = vsel %vm372, %v371, 0
        %385 = vmatpush.msra.mxu0 0.0
        %386 = vmatpush.msra.mxu0 0.0
        %387 = vmatpush.msra.mxu0 0.0
        %388 = vmatpush.msra.mxu0 0.0
        %389 = vmatpush.msra.mxu0 0.0
        %390 = vmatpush.msra.mxu0 0.0
        %391 = vmatpush.msra.mxu0 0.0
        %392 = vmatpush.msra.mxu0 0.0
        %393 = vmatpush.msra.mxu0 %v364
        %394 = vmatpush.msra.mxu0 %v360
        %395 = vmatpush.msra.mxu0 %v356
        %396 = vmatpush.msra.mxu0 %v352
        %397 = vmatpush.msra.mxu0 %v348
        %398 = vmatpush.msra.mxu0 %v344
        %399 = vmatpush.msra.mxu0 %v340
        %400 = vmatpush.msra.mxu0 %v336
        %401 = vmatmul.f32.gmra.mxu0 %v374
        %v402 = vpop.f32.mrf.mxu0
        %v403 = vadd.f32 0.0, %v402
        %404 = vmatmul.f32.gmra.mxu0 %v377
        %v405 = vpop.f32.mrf.mxu0
        %v406 = vadd.f32 0.0, %v405
        %407 = vmatmul.f32.gmra.mxu0 %v380
        %v408 = vpop.f32.mrf.mxu0
        %v409 = vadd.f32 0.0, %v408
        %410 = vmatmul.f32.gmra.mxu0 %v383
        %v411 = vpop.f32.mrf.mxu0
        %v412 = vadd.f32 0.0, %v411
        %413 = vdwg.mxu0
        %414 = vmatpush.msra.mxu0 0.0
        %415 = vmatpush.msra.mxu0 0.0
        %416 = vmatpush.msra.mxu0 0.0
        %417 = vmatpush.msra.mxu0 0.0
        %418 = vmatpush.msra.mxu0 0.0
        %419 = vmatpush.msra.mxu0 0.0
        %420 = vmatpush.msra.mxu0 0.0
        %421 = vmatpush.msra.mxu0 0.0
        %422 = vmatpush.msra.mxu0 %v365
        %423 = vmatpush.msra.mxu0 %v361
        %424 = vmatpush.msra.mxu0 %v357
        %425 = vmatpush.msra.mxu0 %v353
        %426 = vmatpush.msra.mxu0 %v349
        %427 = vmatpush.msra.mxu0 %v345
        %428 = vmatpush.msra.mxu0 %v341
        %429 = vmatpush.msra.mxu0 %v337
        %430 = vmatmul.f32.gmra.mxu0 %v374
        %v431 = vpop.f32.mrf.mxu0
        %v432 = vadd.f32 0.0, %v431
        %433 = vmatmul.f32.gmra.mxu0 %v377
        %v434 = vpop.f32.mrf.mxu0
        %v435 = vadd.f32 0.0, %v434
        %436 = vmatmul.f32.gmra.mxu0 %v380
        %v437 = vpop.f32.mrf.mxu0
        %v438 = vadd.f32 0.0, %v437
        %439 = vmatmul.f32.gmra.mxu0 %v383
        %v440 = vpop.f32.mrf.mxu0
        %v441 = vadd.f32 0.0, %v440
        %442 = vdwg.mxu0
        %443 = vmatpush.msra.mxu0 0.0
        %444 = vmatpush.msra.mxu0 0.0
        %445 = vmatpush.msra.mxu0 0.0
        %446 = vmatpush.msra.mxu0 0.0
        %447 = vmatpush.msra.mxu0 0.0
        %448 = vmatpush.msra.mxu0 0.0
        %449 = vmatpush.msra.mxu0 0.0
        %450 = vmatpush.msra.mxu0 0.0
        %451 = vmatpush.msra.mxu0 %v366
        %452 = vmatpush.msra.mxu0 %v362
        %453 = vmatpush.msra.mxu0 %v358
        %454 = vmatpush.msra.mxu0 %v354
        %455 = vmatpush.msra.mxu0 %v350
        %456 = vmatpush.msra.mxu0 %v346
        %457 = vmatpush.msra.mxu0 %v342
        %458 = vmatpush.msra.mxu0 %v338
        %459 = vmatmul.f32.gmra.mxu0 %v374
        %v460 = vpop.f32.mrf.mxu0
        %v461 = vadd.f32 0.0, %v460
        %462 = vmatmul.f32.gmra.mxu0 %v377
        %v463 = vpop.f32.mrf.mxu0
        %v464 = vadd.f32 0.0, %v463
        %465 = vmatmul.f32.gmra.mxu0 %v380
        %v466 = vpop.f32.mrf.mxu0
        %v467 = vadd.f32 0.0, %v466
        %468 = vmatmul.f32.gmra.mxu0 %v383
        %v469 = vpop.f32.mrf.mxu0
        %v470 = vadd.f32 0.0, %v469
        %471 = vdwg.mxu0
        %472 = vmatpush.msra.mxu0 0.0
        %473 = vmatpush.msra.mxu0 0.0
        %474 = vmatpush.msra.mxu0 0.0
        %475 = vmatpush.msra.mxu0 0.0
        %476 = vmatpush.msra.mxu0 0.0
        %477 = vmatpush.msra.mxu0 0.0
        %478 = vmatpush.msra.mxu0 0.0
        %479 = vmatpush.msra.mxu0 0.0
        %480 = vmatpush.msra.mxu0 %v367
        %481 = vmatpush.msra.mxu0 %v363
        %482 = vmatpush.msra.mxu0 %v359
        %483 = vmatpush.msra.mxu0 %v355
        %484 = vmatpush.msra.mxu0 %v351
        %485 = vmatpush.msra.mxu0 %v347
        %486 = vmatpush.msra.mxu0 %v343
        %487 = vmatpush.msra.mxu0 %v339
        %488 = vmatmul.f32.gmra.mxu0 %v374
        %v489 = vpop.f32.mrf.mxu0
        %v490 = vadd.f32 0.0, %v489
        %491 = vmatmul.f32.gmra.mxu0 %v377
        %v492 = vpop.f32.mrf.mxu0
        %v493 = vadd.f32 0.0, %v492
        %494 = vmatmul.f32.gmra.mxu0 %v380
        %v495 = vpop.f32.mrf.mxu0
        %v496 = vadd.f32 0.0, %v495
        %497 = vmatmul.f32.gmra.mxu0 %v383
        %v498 = vpop.f32.mrf.mxu0
        %v499 = vadd.f32 0.0, %v498
        %500 = vdwg.mxu0
        %v502 = vsel %vm372, %v260, 0
        %v505 = vsel %vm372, %v261, 0
        %v508 = vsel %vm372, %v262, 0
        %v511 = vsel %vm372, %v263, 0
        %513 = vmatpush.msra.mxu0 0.0
        %514 = vmatpush.msra.mxu0 0.0
        %515 = vmatpush.msra.mxu0 0.0
        %516 = vmatpush.msra.mxu0 0.0
        %517 = vmatpush.msra.mxu0 0.0
        %518 = vmatpush.msra.mxu0 0.0
        %519 = vmatpush.msra.mxu0 0.0
        %520 = vmatpush.msra.mxu0 0.0
        %521 = vmatpush.msra.mxu0 %v256
        %522 = vmatpush.msra.mxu0 %v252
        %523 = vmatpush.msra.mxu0 %v248
        %524 = vmatpush.msra.mxu0 %v244
        %525 = vmatpush.msra.mxu0 %v240
        %526 = vmatpush.msra.mxu0 %v236
        %527 = vmatpush.msra.mxu0 %v232
        %528 = vmatpush.msra.mxu0 %v228
        %529 = vmatmul.f32.gmra.mxu0 %v502
        %v530 = vpop.f32.mrf.mxu0
        %v531 = vadd.f32 %v403, %v530
        %532 = vmatmul.f32.gmra.mxu0 %v505
        %v533 = vpop.f32.mrf.mxu0
        %v534 = vadd.f32 %v406, %v533
        %535 = vmatmul.f32.gmra.mxu0 %v508
        %v536 = vpop.f32.mrf.mxu0
        %v537 = vadd.f32 %v409, %v536
        %538 = vmatmul.f32.gmra.mxu0 %v511
        %v539 = vpop.f32.mrf.mxu0
        %v540 = vadd.f32 %v412, %v539
        %541 = vdwg.mxu0
        %542 = vmatpush.msra.mxu0 0.0
        %543 = vmatpush.msra.mxu0 0.0
        %544 = vmatpush.msra.mxu0 0.0
        %545 = vmatpush.msra.mxu0 0.0
        %546 = vmatpush.msra.mxu0 0.0
        %547 = vmatpush.msra.mxu0 0.0
        %548 = vmatpush.msra.mxu0 0.0
        %549 = vmatpush.msra.mxu0 0.0
        %550 = vmatpush.msra.mxu0 %v257
        %551 = vmatpush.msra.mxu0 %v253
        %552 = vmatpush.msra.mxu0 %v249
        %553 = vmatpush.msra.mxu0 %v245
        %554 = vmatpush.msra.mxu0 %v241
        %555 = vmatpush.msra.mxu0 %v237
        %556 = vmatpush.msra.mxu0 %v233
        %557 = vmatpush.msra.mxu0 %v229
        %558 = vmatmul.f32.gmra.mxu0 %v502
        %v559 = vpop.f32.mrf.mxu0
        %v560 = vadd.f32 %v432, %v559
        %561 = vmatmul.f32.gmra.mxu0 %v505
        %v562 = vpop.f32.mrf.mxu0
        %v563 = vadd.f32 %v435, %v562
        %564 = vmatmul.f32.gmra.mxu0 %v508
        %v565 = vpop.f32.mrf.mxu0
        %v566 = vadd.f32 %v438, %v565
        %567 = vmatmul.f32.gmra.mxu0 %v511
        %v568 = vpop.f32.mrf.mxu0
        %v569 = vadd.f32 %v441, %v568
        %570 = vdwg.mxu0
        %571 = vmatpush.msra.mxu0 0.0
        %572 = vmatpush.msra.mxu0 0.0
        %573 = vmatpush.msra.mxu0 0.0
        %574 = vmatpush.msra.mxu0 0.0
        %575 = vmatpush.msra.mxu0 0.0
        %576 = vmatpush.msra.mxu0 0.0
        %577 = vmatpush.msra.mxu0 0.0
        %578 = vmatpush.msra.mxu0 0.0
        %579 = vmatpush.msra.mxu0 %v258
        %580 = vmatpush.msra.mxu0 %v254
        %581 = vmatpush.msra.mxu0 %v250
        %582 = vmatpush.msra.mxu0 %v246
        %583 = vmatpush.msra.mxu0 %v242
        %584 = vmatpush.msra.mxu0 %v238
        %585 = vmatpush.msra.mxu0 %v234
        %586 = vmatpush.msra.mxu0 %v230
        %587 = vmatmul.f32.gmra.mxu0 %v502
        %v588 = vpop.f32.mrf.mxu0
        %v589 = vadd.f32 %v461, %v588
        %590 = vmatmul.f32.gmra.mxu0 %v505
        %v591 = vpop.f32.mrf.mxu0
        %v592 = vadd.f32 %v464, %v591
        %593 = vmatmul.f32.gmra.mxu0 %v508
        %v594 = vpop.f32.mrf.mxu0
        %v595 = vadd.f32 %v467, %v594
        %596 = vmatmul.f32.gmra.mxu0 %v511
        %v597 = vpop.f32.mrf.mxu0
        %v598 = vadd.f32 %v470, %v597
        %599 = vdwg.mxu0
        %600 = vmatpush.msra.mxu0 0.0
        %601 = vmatpush.msra.mxu0 0.0
        %602 = vmatpush.msra.mxu0 0.0
        %603 = vmatpush.msra.mxu0 0.0
        %604 = vmatpush.msra.mxu0 0.0
        %605 = vmatpush.msra.mxu0 0.0
        %606 = vmatpush.msra.mxu0 0.0
        %607 = vmatpush.msra.mxu0 0.0
        %608 = vmatpush.msra.mxu0 %v259
        %609 = vmatpush.msra.mxu0 %v255
        %610 = vmatpush.msra.mxu0 %v251
        %611 = vmatpush.msra.mxu0 %v247
        %612 = vmatpush.msra.mxu0 %v243
        %613 = vmatpush.msra.mxu0 %v239
        %614 = vmatpush.msra.mxu0 %v235
        %615 = vmatpush.msra.mxu0 %v231
        %616 = vmatmul.f32.gmra.mxu0 %v502
        %v617 = vpop.f32.mrf.mxu0
        %v618 = vadd.f32 %v490, %v617
        %619 = vmatmul.f32.gmra.mxu0 %v505
        %v620 = vpop.f32.mrf.mxu0
        %v621 = vadd.f32 %v493, %v620
        %622 = vmatmul.f32.gmra.mxu0 %v508
        %v623 = vpop.f32.mrf.mxu0
        %v624 = vadd.f32 %v496, %v623
        %625 = vmatmul.f32.gmra.mxu0 %v511
        %v626 = vpop.f32.mrf.mxu0
        %v627 = vadd.f32 %v499, %v626
        %628 = vdwg.mxu0
        %v629 = vperm.slane %v145, 2
        %v630 = vperm.slane %v145, 6
        %v631 = vperm.slane %v146, 2
        %v632 = vperm.slane %v146, 6
        %v633 = vperm.slane %v629, 2
        %v634 = vperm.slane %v630, 2
        %v635 = vperm.slane %v631, 2
        %v636 = vperm.slane %v632, 2
        %vm637 = vcmp.eq.s32.totalorder %v148, %v633
        %vm638 = vcmp.eq.s32.totalorder %v148, %v634
        %vm639 = vcmp.eq.s32.totalorder %v148, %v635
        %vm640 = vcmp.eq.s32.totalorder %v148, %v636
        %vm641 = vcmp.eq.s32.totalorder %v149, %v633
        %vm642 = vcmp.eq.s32.totalorder %v149, %v634
        %vm643 = vcmp.eq.s32.totalorder %v149, %v635
        %vm644 = vcmp.eq.s32.totalorder %v149, %v636
        %vm645 = vcmp.eq.s32.totalorder %v150, %v633
        %vm646 = vcmp.eq.s32.totalorder %v150, %v634
        %vm647 = vcmp.eq.s32.totalorder %v150, %v635
        %vm648 = vcmp.eq.s32.totalorder %v150, %v636
        %vm649 = vcmp.eq.s32.totalorder %v151, %v633
        %vm650 = vcmp.eq.s32.totalorder %v151, %v634
        %vm651 = vcmp.eq.s32.totalorder %v151, %v635
        %vm652 = vcmp.eq.s32.totalorder %v151, %v636
        %vm653 = vcmp.eq.s32.totalorder %v152, %v633
        %vm654 = vcmp.eq.s32.totalorder %v152, %v634
        %vm655 = vcmp.eq.s32.totalorder %v152, %v635
        %vm656 = vcmp.eq.s32.totalorder %v152, %v636
        %vm657 = vcmp.eq.s32.totalorder %v153, %v633
        %vm658 = vcmp.eq.s32.totalorder %v153, %v634
        %vm659 = vcmp.eq.s32.totalorder %v153, %v635
        %vm660 = vcmp.eq.s32.totalorder %v153, %v636
        %vm661 = vcmp.eq.s32.totalorder %v154, %v633
        %vm662 = vcmp.eq.s32.totalorder %v154, %v634
        %vm663 = vcmp.eq.s32.totalorder %v154, %v635
        %vm664 = vcmp.eq.s32.totalorder %v154, %v636
        %vm665 = vcmp.eq.s32.totalorder %v155, %v633
        %vm666 = vcmp.eq.s32.totalorder %v155, %v634
        %vm667 = vcmp.eq.s32.totalorder %v155, %v635
        %vm668 = vcmp.eq.s32.totalorder %v155, %v636
        %v669 = vsel %vm637, 1, 0
        %v670 = vsel %vm638, 1, 0
        %v671 = vsel %vm639, 1, 0
        %v672 = vsel %vm640, 1, 0
        %v673 = vsel %vm641, 1, 0
        %v674 = vsel %vm642, 1, 0
        %v675 = vsel %vm643, 1, 0
        %v676 = vsel %vm644, 1, 0
        %v677 = vsel %vm645, 1, 0
        %v678 = vsel %vm646, 1, 0
        %v679 = vsel %vm647, 1, 0
        %v680 = vsel %vm648, 1, 0
        %v681 = vsel %vm649, 1, 0
        %v682 = vsel %vm650, 1, 0
        %v683 = vsel %vm651, 1, 0
        %v684 = vsel %vm652, 1, 0
        %v685 = vsel %vm653, 1, 0
        %v686 = vsel %vm654, 1, 0
        %v687 = vsel %vm655, 1, 0
        %v688 = vsel %vm656, 1, 0
        %v689 = vsel %vm657, 1, 0
        %v690 = vsel %vm658, 1, 0
        %v691 = vsel %vm659, 1, 0
        %v692 = vsel %vm660, 1, 0
        %v693 = vsel %vm661, 1, 0
        %v694 = vsel %vm662, 1, 0
        %v695 = vsel %vm663, 1, 0
        %v696 = vsel %vm664, 1, 0
        %v697 = vsel %vm665, 1, 0
        %v698 = vsel %vm666, 1, 0
        %v699 = vsel %vm667, 1, 0
        %v700 = vsel %vm668, 1, 0
        %v701 = vcvt.s32.f32 %v669
        %v702 = vcvt.s32.f32 %v670
        %v703 = vcvt.s32.f32 %v671
        %v704 = vcvt.s32.f32 %v672
        %v705 = vcvt.s32.f32 %v673
        %v706 = vcvt.s32.f32 %v674
        %v707 = vcvt.s32.f32 %v675
        %v708 = vcvt.s32.f32 %v676
        %v709 = vcvt.s32.f32 %v677
        %v710 = vcvt.s32.f32 %v678
        %v711 = vcvt.s32.f32 %v679
        %v712 = vcvt.s32.f32 %v680
        %v713 = vcvt.s32.f32 %v681
        %v714 = vcvt.s32.f32 %v682
        %v715 = vcvt.s32.f32 %v683
        %v716 = vcvt.s32.f32 %v684
        %v717 = vcvt.s32.f32 %v685
        %v718 = vcvt.s32.f32 %v686
        %v719 = vcvt.s32.f32 %v687
        %v720 = vcvt.s32.f32 %v688
        %v721 = vcvt.s32.f32 %v689
        %v722 = vcvt.s32.f32 %v690
        %v723 = vcvt.s32.f32 %v691
        %v724 = vcvt.s32.f32 %v692
        %v725 = vcvt.s32.f32 %v693
        %v726 = vcvt.s32.f32 %v694
        %v727 = vcvt.s32.f32 %v695
        %v728 = vcvt.s32.f32 %v696
        %v729 = vcvt.s32.f32 %v697
        %v730 = vcvt.s32.f32 %v698
        %v731 = vcvt.s32.f32 %v699
        %v732 = vcvt.s32.f32 %v700
        %v733 = vld [vmem:[%s1 + $0x10] sm:$0xff]
        %v734 = vld [vmem:[%s1 + $0x40] sm:$0xff]
        %v735 = vld [vmem:[%s1 + $0x70] sm:$0xff]
        %v736 = vld [vmem:[%s1 + $0xa0] sm:$0xff]
        %v738 = vsel %vm372, %v733, 0
        %v741 = vsel %vm372, %v734, 0
        %v744 = vsel %vm372, %v735, 0
        %v747 = vsel %vm372, %v736, 0
        %749 = vmatpush.msra.mxu0 0.0
        %750 = vmatpush.msra.mxu0 0.0
        %751 = vmatpush.msra.mxu0 0.0
        %752 = vmatpush.msra.mxu0 0.0
        %753 = vmatpush.msra.mxu0 0.0
        %754 = vmatpush.msra.mxu0 0.0
        %755 = vmatpush.msra.mxu0 0.0
        %756 = vmatpush.msra.mxu0 0.0
        %757 = vmatpush.msra.mxu0 %v729
        %758 = vmatpush.msra.mxu0 %v725
        %759 = vmatpush.msra.mxu0 %v721
        %760 = vmatpush.msra.mxu0 %v717
        %761 = vmatpush.msra.mxu0 %v713
        %762 = vmatpush.msra.mxu0 %v709
        %763 = vmatpush.msra.mxu0 %v705
        %764 = vmatpush.msra.mxu0 %v701
        %765 = vmatmul.f32.gmra.mxu0 %v738
        %v766 = vpop.f32.mrf.mxu0
        %v767 = vadd.f32 0.0, %v766
        %768 = vmatmul.f32.gmra.mxu0 %v741
        %v769 = vpop.f32.mrf.mxu0
        %v770 = vadd.f32 0.0, %v769
        %771 = vmatmul.f32.gmra.mxu0 %v744
        %v772 = vpop.f32.mrf.mxu0
        %v773 = vadd.f32 0.0, %v772
        %774 = vmatmul.f32.gmra.mxu0 %v747
        %v775 = vpop.f32.mrf.mxu0
        %v776 = vadd.f32 0.0, %v775
        %777 = vdwg.mxu0
        %778 = vmatpush.msra.mxu0 0.0
        %779 = vmatpush.msra.mxu0 0.0
        %780 = vmatpush.msra.mxu0 0.0
        %781 = vmatpush.msra.mxu0 0.0
        %782 = vmatpush.msra.mxu0 0.0
        %783 = vmatpush.msra.mxu0 0.0
        %784 = vmatpush.msra.mxu0 0.0
        %785 = vmatpush.msra.mxu0 0.0
        %786 = vmatpush.msra.mxu0 %v730
        %787 = vmatpush.msra.mxu0 %v726
        %788 = vmatpush.msra.mxu0 %v722
        %789 = vmatpush.msra.mxu0 %v718
        %790 = vmatpush.msra.mxu0 %v714
        %791 = vmatpush.msra.mxu0 %v710
        %792 = vmatpush.msra.mxu0 %v706
        %793 = vmatpush.msra.mxu0 %v702
        %794 = vmatmul.f32.gmra.mxu0 %v738
        %v795 = vpop.f32.mrf.mxu0
        %v796 = vadd.f32 0.0, %v795
        %797 = vmatmul.f32.gmra.mxu0 %v741
        %v798 = vpop.f32.mrf.mxu0
        %v799 = vadd.f32 0.0, %v798
        %800 = vmatmul.f32.gmra.mxu0 %v744
        %v801 = vpop.f32.mrf.mxu0
        %v802 = vadd.f32 0.0, %v801
        %803 = vmatmul.f32.gmra.mxu0 %v747
        %v804 = vpop.f32.mrf.mxu0
        %v805 = vadd.f32 0.0, %v804
        %806 = vdwg.mxu0
        %807 = vmatpush.msra.mxu0 0.0
        %808 = vmatpush.msra.mxu0 0.0
        %809 = vmatpush.msra.mxu0 0.0
        %810 = vmatpush.msra.mxu0 0.0
        %811 = vmatpush.msra.mxu0 0.0
        %812 = vmatpush.msra.mxu0 0.0
        %813 = vmatpush.msra.mxu0 0.0
        %814 = vmatpush.msra.mxu0 0.0
        %815 = vmatpush.msra.mxu0 %v731
        %816 = vmatpush.msra.mxu0 %v727
        %817 = vmatpush.msra.mxu0 %v723
        %818 = vmatpush.msra.mxu0 %v719
        %819 = vmatpush.msra.mxu0 %v715
        %820 = vmatpush.msra.mxu0 %v711
        %821 = vmatpush.msra.mxu0 %v707
        %822 = vmatpush.msra.mxu0 %v703
        %823 = vmatmul.f32.gmra.mxu0 %v738
        %v824 = vpop.f32.mrf.mxu0
        %v825 = vadd.f32 0.0, %v824
        %826 = vmatmul.f32.gmra.mxu0 %v741
        %v827 = vpop.f32.mrf.mxu0
        %v828 = vadd.f32 0.0, %v827
        %829 = vmatmul.f32.gmra.mxu0 %v744
        %v830 = vpop.f32.mrf.mxu0
        %v831 = vadd.f32 0.0, %v830
        %832 = vmatmul.f32.gmra.mxu0 %v747
        %v833 = vpop.f32.mrf.mxu0
        %v834 = vadd.f32 0.0, %v833
        %835 = vdwg.mxu0
        %836 = vmatpush.msra.mxu0 0.0
        %837 = vmatpush.msra.mxu0 0.0
        %838 = vmatpush.msra.mxu0 0.0
        %839 = vmatpush.msra.mxu0 0.0
        %840 = vmatpush.msra.mxu0 0.0
        %841 = vmatpush.msra.mxu0 0.0
        %842 = vmatpush.msra.mxu0 0.0
        %843 = vmatpush.msra.mxu0 0.0
        %844 = vmatpush.msra.mxu0 %v732
        %845 = vmatpush.msra.mxu0 %v728
        %846 = vmatpush.msra.mxu0 %v724
        %847 = vmatpush.msra.mxu0 %v720
        %848 = vmatpush.msra.mxu0 %v716
        %849 = vmatpush.msra.mxu0 %v712
        %850 = vmatpush.msra.mxu0 %v708
        %851 = vmatpush.msra.mxu0 %v704
        %852 = vmatmul.f32.gmra.mxu0 %v738
        %v853 = vpop.f32.mrf.mxu0
        %v854 = vadd.f32 0.0, %v853
        %855 = vmatmul.f32.gmra.mxu0 %v741
        %v856 = vpop.f32.mrf.mxu0
        %v857 = vadd.f32 0.0, %v856
        %858 = vmatmul.f32.gmra.mxu0 %v744
        %v859 = vpop.f32.mrf.mxu0
        %v860 = vadd.f32 0.0, %v859
        %861 = vmatmul.f32.gmra.mxu0 %v747
        %v862 = vpop.f32.mrf.mxu0
        %v863 = vadd.f32 0.0, %v862
        %864 = vdwg.mxu0
        %v865 = vadd.f32 %v531, %v767
        %v866 = vadd.f32 %v560, %v796
        %v867 = vadd.f32 %v589, %v825
        %v868 = vadd.f32 %v618, %v854
        %v869 = vadd.f32 %v534, %v770
        %v870 = vadd.f32 %v563, %v799
        %v871 = vadd.f32 %v592, %v828
        %v872 = vadd.f32 %v621, %v857
        %v873 = vadd.f32 %v537, %v773
        %v874 = vadd.f32 %v566, %v802
        %v875 = vadd.f32 %v595, %v831
        %v876 = vadd.f32 %v624, %v860
        %v877 = vadd.f32 %v540, %v776
        %v878 = vadd.f32 %v569, %v805
        %v879 = vadd.f32 %v598, %v834
        %v880 = vadd.f32 %v627, %v863
        %v881 = vperm.slane %v145, 3
        %v882 = vperm.slane %v145, 7
        %v883 = vperm.slane %v146, 3
        %v884 = vperm.slane %v146, 7
        %v885 = vperm.slane %v881, 3
        %v886 = vperm.slane %v882, 3
        %v887 = vperm.slane %v883, 3
        %v888 = vperm.slane %v884, 3
        %vm889 = vcmp.eq.s32.totalorder %v148, %v885
        %vm890 = vcmp.eq.s32.totalorder %v148, %v886
        %vm891 = vcmp.eq.s32.totalorder %v148, %v887
        %vm892 = vcmp.eq.s32.totalorder %v148, %v888
        %vm893 = vcmp.eq.s32.totalorder %v149, %v885
        %vm894 = vcmp.eq.s32.totalorder %v149, %v886
        %vm895 = vcmp.eq.s32.totalorder %v149, %v887
        %vm896 = vcmp.eq.s32.totalorder %v149, %v888
        %vm897 = vcmp.eq.s32.totalorder %v150, %v885
        %vm898 = vcmp.eq.s32.totalorder %v150, %v886
        %vm899 = vcmp.eq.s32.totalorder %v150, %v887
        %vm900 = vcmp.eq.s32.totalorder %v150, %v888
        %vm901 = vcmp.eq.s32.totalorder %v151, %v885
        %vm902 = vcmp.eq.s32.totalorder %v151, %v886
        %vm903 = vcmp.eq.s32.totalorder %v151, %v887
        %vm904 = vcmp.eq.s32.totalorder %v151, %v888
        %vm905 = vcmp.eq.s32.totalorder %v152, %v885
        %vm906 = vcmp.eq.s32.totalorder %v152, %v886
        %vm907 = vcmp.eq.s32.totalorder %v152, %v887
        %vm908 = vcmp.eq.s32.totalorder %v152, %v888
        %vm909 = vcmp.eq.s32.totalorder %v153, %v885
        %vm910 = vcmp.eq.s32.totalorder %v153, %v886
        %vm911 = vcmp.eq.s32.totalorder %v153, %v887
        %vm912 = vcmp.eq.s32.totalorder %v153, %v888
        %vm913 = vcmp.eq.s32.totalorder %v154, %v885
        %vm914 = vcmp.eq.s32.totalorder %v154, %v886
        %vm915 = vcmp.eq.s32.totalorder %v154, %v887
        %vm916 = vcmp.eq.s32.totalorder %v154, %v888
        %vm917 = vcmp.eq.s32.totalorder %v155, %v885
        %vm918 = vcmp.eq.s32.totalorder %v155, %v886
        %vm919 = vcmp.eq.s32.totalorder %v155, %v887
        %vm920 = vcmp.eq.s32.totalorder %v155, %v888
        %v921 = vsel %vm889, 1, 0
        %v922 = vsel %vm890, 1, 0
        %v923 = vsel %vm891, 1, 0
        %v924 = vsel %vm892, 1, 0
        %v925 = vsel %vm893, 1, 0
        %v926 = vsel %vm894, 1, 0
        %v927 = vsel %vm895, 1, 0
        %v928 = vsel %vm896, 1, 0
        %v929 = vsel %vm897, 1, 0
        %v930 = vsel %vm898, 1, 0
        %v931 = vsel %vm899, 1, 0
        %v932 = vsel %vm900, 1, 0
        %v933 = vsel %vm901, 1, 0
        %v934 = vsel %vm902, 1, 0
        %v935 = vsel %vm903, 1, 0
        %v936 = vsel %vm904, 1, 0
        %v937 = vsel %vm905, 1, 0
        %v938 = vsel %vm906, 1, 0
        %v939 = vsel %vm907, 1, 0
        %v940 = vsel %vm908, 1, 0
        %v941 = vsel %vm909, 1, 0
        %v942 = vsel %vm910, 1, 0
        %v943 = vsel %vm911, 1, 0
        %v944 = vsel %vm912, 1, 0
        %v945 = vsel %vm913, 1, 0
        %v946 = vsel %vm914, 1, 0
        %v947 = vsel %vm915, 1, 0
        %v948 = vsel %vm916, 1, 0
        %v949 = vsel %vm917, 1, 0
        %v950 = vsel %vm918, 1, 0
        %v951 = vsel %vm919, 1, 0
        %v952 = vsel %vm920, 1, 0
        %v953 = vcvt.s32.f32 %v921
        %v954 = vcvt.s32.f32 %v922
        %v955 = vcvt.s32.f32 %v923
        %v956 = vcvt.s32.f32 %v924
        %v957 = vcvt.s32.f32 %v925
        %v958 = vcvt.s32.f32 %v926
        %v959 = vcvt.s32.f32 %v927
        %v960 = vcvt.s32.f32 %v928
        %v961 = vcvt.s32.f32 %v929
        %v962 = vcvt.s32.f32 %v930
        %v963 = vcvt.s32.f32 %v931
        %v964 = vcvt.s32.f32 %v932
        %v965 = vcvt.s32.f32 %v933
        %v966 = vcvt.s32.f32 %v934
        %v967 = vcvt.s32.f32 %v935
        %v968 = vcvt.s32.f32 %v936
        %v969 = vcvt.s32.f32 %v937
        %v970 = vcvt.s32.f32 %v938
        %v971 = vcvt.s32.f32 %v939
        %v972 = vcvt.s32.f32 %v940
        %v973 = vcvt.s32.f32 %v941
        %v974 = vcvt.s32.f32 %v942
        %v975 = vcvt.s32.f32 %v943
        %v976 = vcvt.s32.f32 %v944
        %v977 = vcvt.s32.f32 %v945
        %v978 = vcvt.s32.f32 %v946
        %v979 = vcvt.s32.f32 %v947
        %v980 = vcvt.s32.f32 %v948
        %v981 = vcvt.s32.f32 %v949
        %v982 = vcvt.s32.f32 %v950
        %v983 = vcvt.s32.f32 %v951
        %v984 = vcvt.s32.f32 %v952
        %v985 = vld [vmem:[%s1 + $0x18] sm:$0xff]
        %v986 = vld [vmem:[%s1 + $0x48] sm:$0xff]
        %v987 = vld [vmem:[%s1 + $0x78] sm:$0xff]
        %v988 = vld [vmem:[%s1 + $0xa8] sm:$0xff]
        %v990 = vsel %vm372, %v985, 0
        %v993 = vsel %vm372, %v986, 0
        %v996 = vsel %vm372, %v987, 0
        %v999 = vsel %vm372, %v988, 0
        %1001 = vmatpush.msra.mxu0 0.0
        %1002 = vmatpush.msra.mxu0 0.0
        %1003 = vmatpush.msra.mxu0 0.0
        %1004 = vmatpush.msra.mxu0 0.0
        %1005 = vmatpush.msra.mxu0 0.0
        %1006 = vmatpush.msra.mxu0 0.0
        %1007 = vmatpush.msra.mxu0 0.0
        %1008 = vmatpush.msra.mxu0 0.0
        %1009 = vmatpush.msra.mxu0 %v981
        %1010 = vmatpush.msra.mxu0 %v977
        %1011 = vmatpush.msra.mxu0 %v973
        %1012 = vmatpush.msra.mxu0 %v969
        %1013 = vmatpush.msra.mxu0 %v965
        %1014 = vmatpush.msra.mxu0 %v961
        %1015 = vmatpush.msra.mxu0 %v957
        %1016 = vmatpush.msra.mxu0 %v953
        %1017 = vmatmul.f32.gmra.mxu0 %v990
        %v1018 = vpop.f32.mrf.mxu0
        %v1019 = vadd.f32 0.0, %v1018
        %1020 = vmatmul.f32.gmra.mxu0 %v993
        %v1021 = vpop.f32.mrf.mxu0
        %v1022 = vadd.f32 0.0, %v1021
        %1023 = vmatmul.f32.gmra.mxu0 %v996
        %v1024 = vpop.f32.mrf.mxu0
        %v1025 = vadd.f32 0.0, %v1024
        %1026 = vmatmul.f32.gmra.mxu0 %v999
        %v1027 = vpop.f32.mrf.mxu0
        %v1028 = vadd.f32 0.0, %v1027
        %1029 = vdwg.mxu0
        %1030 = vmatpush.msra.mxu0 0.0
        %1031 = vmatpush.msra.mxu0 0.0
        %1032 = vmatpush.msra.mxu0 0.0
        %1033 = vmatpush.msra.mxu0 0.0
        %1034 = vmatpush.msra.mxu0 0.0
        %1035 = vmatpush.msra.mxu0 0.0
        %1036 = vmatpush.msra.mxu0 0.0
        %1037 = vmatpush.msra.mxu0 0.0
        %1038 = vmatpush.msra.mxu0 %v982
        %1039 = vmatpush.msra.mxu0 %v978
        %1040 = vmatpush.msra.mxu0 %v974
        %1041 = vmatpush.msra.mxu0 %v970
        %1042 = vmatpush.msra.mxu0 %v966
        %1043 = vmatpush.msra.mxu0 %v962
        %1044 = vmatpush.msra.mxu0 %v958
        %1045 = vmatpush.msra.mxu0 %v954
        %1046 = vmatmul.f32.gmra.mxu0 %v990
        %v1047 = vpop.f32.mrf.mxu0
        %v1048 = vadd.f32 0.0, %v1047
        %1049 = vmatmul.f32.gmra.mxu0 %v993
        %v1050 = vpop.f32.mrf.mxu0
        %v1051 = vadd.f32 0.0, %v1050
        %1052 = vmatmul.f32.gmra.mxu0 %v996
        %v1053 = vpop.f32.mrf.mxu0
        %v1054 = vadd.f32 0.0, %v1053
        %1055 = vmatmul.f32.gmra.mxu0 %v999
        %v1056 = vpop.f32.mrf.mxu0
        %v1057 = vadd.f32 0.0, %v1056
        %1058 = vdwg.mxu0
        %1059 = vmatpush.msra.mxu0 0.0
        %1060 = vmatpush.msra.mxu0 0.0
        %1061 = vmatpush.msra.mxu0 0.0
        %1062 = vmatpush.msra.mxu0 0.0
        %1063 = vmatpush.msra.mxu0 0.0
        %1064 = vmatpush.msra.mxu0 0.0
        %1065 = vmatpush.msra.mxu0 0.0
        %1066 = vmatpush.msra.mxu0 0.0
        %1067 = vmatpush.msra.mxu0 %v983
        %1068 = vmatpush.msra.mxu0 %v979
        %1069 = vmatpush.msra.mxu0 %v975
        %1070 = vmatpush.msra.mxu0 %v971
        %1071 = vmatpush.msra.mxu0 %v967
        %1072 = vmatpush.msra.mxu0 %v963
        %1073 = vmatpush.msra.mxu0 %v959
        %1074 = vmatpush.msra.mxu0 %v955
        %1075 = vmatmul.f32.gmra.mxu0 %v990
        %v1076 = vpop.f32.mrf.mxu0
        %v1077 = vadd.f32 0.0, %v1076
        %1078 = vmatmul.f32.gmra.mxu0 %v993
        %v1079 = vpop.f32.mrf.mxu0
        %v1080 = vadd.f32 0.0, %v1079
        %1081 = vmatmul.f32.gmra.mxu0 %v996
        %v1082 = vpop.f32.mrf.mxu0
        %v1083 = vadd.f32 0.0, %v1082
        %1084 = vmatmul.f32.gmra.mxu0 %v999
        %v1085 = vpop.f32.mrf.mxu0
        %v1086 = vadd.f32 0.0, %v1085
        %1087 = vdwg.mxu0
        %1088 = vmatpush.msra.mxu0 0.0
        %1089 = vmatpush.msra.mxu0 0.0
        %1090 = vmatpush.msra.mxu0 0.0
        %1091 = vmatpush.msra.mxu0 0.0
        %1092 = vmatpush.msra.mxu0 0.0
        %1093 = vmatpush.msra.mxu0 0.0
        %1094 = vmatpush.msra.mxu0 0.0
        %1095 = vmatpush.msra.mxu0 0.0
        %1096 = vmatpush.msra.mxu0 %v984
        %1097 = vmatpush.msra.mxu0 %v980
        %1098 = vmatpush.msra.mxu0 %v976
        %1099 = vmatpush.msra.mxu0 %v972
        %1100 = vmatpush.msra.mxu0 %v968
        %1101 = vmatpush.msra.mxu0 %v964
        %1102 = vmatpush.msra.mxu0 %v960
        %1103 = vmatpush.msra.mxu0 %v956
        %1104 = vmatmul.f32.gmra.mxu0 %v990
        %v1105 = vpop.f32.mrf.mxu0
        %v1106 = vadd.f32 0.0, %v1105
        %1107 = vmatmul.f32.gmra.mxu0 %v993
        %v1108 = vpop.f32.mrf.mxu0
        %v1109 = vadd.f32 0.0, %v1108
        %1110 = vmatmul.f32.gmra.mxu0 %v996
        %v1111 = vpop.f32.mrf.mxu0
        %v1112 = vadd.f32 0.0, %v1111
        %1113 = vmatmul.f32.gmra.mxu0 %v999
        %v1114 = vpop.f32.mrf.mxu0
        %v1115 = vadd.f32 0.0, %v1114
        %1116 = vdwg.mxu0
        %v1117 = vadd.f32 %v865, %v1019
        %v1118 = vadd.f32 %v866, %v1048
        %v1119 = vadd.f32 %v867, %v1077
        %v1120 = vadd.f32 %v868, %v1106
        %v1121 = vadd.f32 %v869, %v1022
        %v1122 = vadd.f32 %v870, %v1051
        %v1123 = vadd.f32 %v871, %v1080
        %v1124 = vadd.f32 %v872, %v1109
        %v1125 = vadd.f32 %v873, %v1025
        %v1126 = vadd.f32 %v874, %v1054
        %v1127 = vadd.f32 %v875, %v1083
        %v1128 = vadd.f32 %v876, %v1112
        %v1129 = vadd.f32 %v877, %v1028
        %v1130 = vadd.f32 %v878, %v1057
        %v1131 = vadd.f32 %v879, %v1086
        %v1132 = vadd.f32 %v880, %v1115
        %v1133 = vld [vmem:[%s1 + $0x20] sm:$0xff]
        %v1134 = vld [vmem:[%s1 + $0x50] sm:$0xff]
        %v1135 = vld [vmem:[%s1 + $0x80] sm:$0xff]
        %v1136 = vld [vmem:[%s1 + $0xb0] sm:$0xff]
        %v1137 = vld [vmem:[%s1 + $0x28] sm:$0xff]
        %v1138 = vld [vmem:[%s1 + $0x58] sm:$0xff]
        %v1139 = vld [vmem:[%s1 + $0x88] sm:$0xff]
        %v1140 = vld [vmem:[%s1 + $0xb8] sm:$0xff]
        %v1141 = vld [vmem:[%s1 + $0x28] ss:$0 sm:$0xff]
        %1143 = vset.pattern.permute.xlu0 0
        %1144 = vperm.xlu0 %1143, %v1137
        %v1145 = vpop.permute.xlu0 %1144
        %1148 = vset.pattern.permute.xlu0 0
        %1149 = vperm.xlu0 %1148, %v1138
        %v1150 = vpop.permute.xlu0 %1149
        %1153 = vset.pattern.permute.xlu0 0
        %1154 = vperm.xlu0 %1153, %v1139
        %v1155 = vpop.permute.xlu0 %1154
        %1158 = vset.pattern.permute.xlu0 0
        %1159 = vperm.xlu0 %1158, %v1140
        %v1160 = vpop.permute.xlu0 %1159
        %v1162 = vadd.f32 %v1117, %v1145
        %v1163 = vadd.f32 %v1118, %v1145
        %v1164 = vadd.f32 %v1119, %v1145
        %v1165 = vadd.f32 %v1120, %v1145
        %v1166 = vadd.f32 %v1121, %v1150
        %v1167 = vadd.f32 %v1122, %v1150
        %v1168 = vadd.f32 %v1123, %v1150
        %v1169 = vadd.f32 %v1124, %v1150
        %v1170 = vadd.f32 %v1125, %v1155
        %v1171 = vadd.f32 %v1126, %v1155
        %v1172 = vadd.f32 %v1127, %v1155
        %v1173 = vadd.f32 %v1128, %v1155
        %v1174 = vadd.f32 %v1129, %v1160
        %v1175 = vadd.f32 %v1130, %v1160
        %v1176 = vadd.f32 %v1131, %v1160
        %v1177 = vadd.f32 %v1132, %v1160
        %v1178 = vmax.f32 %v1162, 0.0
        %v1179 = vmax.f32 %v1163, 0.0
        %v1180 = vmax.f32 %v1164, 0.0
        %v1181 = vmax.f32 %v1165, 0.0
        %v1182 = vmax.f32 %v1166, 0.0
        %v1183 = vmax.f32 %v1167, 0.0
        %v1184 = vmax.f32 %v1168, 0.0
        %v1185 = vmax.f32 %v1169, 0.0
        %v1186 = vmax.f32 %v1170, 0.0
        %v1187 = vmax.f32 %v1171, 0.0
        %v1188 = vmax.f32 %v1172, 0.0
        %v1189 = vmax.f32 %v1173, 0.0
        %v1190 = vmax.f32 %v1174, 0.0
        %v1191 = vmax.f32 %v1175, 0.0
        %v1192 = vmax.f32 %v1176, 0.0
        %v1193 = vmax.f32 %v1177, 0.0
        %1194 = vset.pattern.permute.xlu0 1
        %1195 = vperm.xlu0 %1194, %v1137
        %v1196 = vpop.permute.xlu0 %1195
        %1198 = vset.pattern.permute.xlu0 1
        %1199 = vperm.xlu0 %1198, %v1138
        %v1200 = vpop.permute.xlu0 %1199
        %1202 = vset.pattern.permute.xlu0 1
        %1203 = vperm.xlu0 %1202, %v1139
        %v1204 = vpop.permute.xlu0 %1203
        %1206 = vset.pattern.permute.xlu0 1
        %1207 = vperm.xlu0 %1206, %v1140
        %v1208 = vpop.permute.xlu0 %1207
        %vm1210 = vcmask 261120
        %v1212 = vsel %vm1210, %v1133, 0
        %v1215 = vsel %vm1210, %v1134, 0
        %v1218 = vsel %vm1210, %v1135, 0
        %v1221 = vsel %vm1210, %v1136, 0
        %1223 = vmatpush.msra.mxu0 0.0
        %1224 = vmatpush.msra.mxu0 0.0
        %1225 = vmatpush.msra.mxu0 0.0
        %1226 = vmatpush.msra.mxu0 0.0
        %1227 = vmatpush.msra.mxu0 0.0
        %1228 = vmatpush.msra.mxu0 0.0
        %1229 = vmatpush.msra.mxu0 0.0
        %1230 = vmatpush.msra.mxu0 0.0
        %1231 = vmatpush.msra.mxu0 0.0
        %1232 = vmatpush.msra.mxu0 0.0
        %1233 = vmatpush.msra.mxu0 0.0
        %1234 = vmatpush.msra.mxu0 0.0
        %1235 = vmatpush.msra.mxu0 %v1190
        %1236 = vmatpush.msra.mxu0 %v1186
        %1237 = vmatpush.msra.mxu0 %v1182
        %1238 = vmatpush.msra.mxu0 %v1178
        %1239 = vmatmul.f32.gmra.mxu0 %v1212
        %v1240 = vpop.f32.mrf.mxu0
        %v1241 = vadd.f32 %v1196, %v1240
        %1242 = vmatmul.f32.gmra.mxu0 %v1215
        %v1243 = vpop.f32.mrf.mxu0
        %v1244 = vadd.f32 %v1200, %v1243
        %1245 = vmatmul.f32.gmra.mxu0 %v1218
        %v1246 = vpop.f32.mrf.mxu0
        %v1247 = vadd.f32 %v1204, %v1246
        %1248 = vmatmul.f32.gmra.mxu0 %v1221
        %v1249 = vpop.f32.mrf.mxu0
        %v1250 = vadd.f32 %v1208, %v1249
        %1251 = vdwg.mxu0
        %1252 = vmatpush.msra.mxu0 0.0
        %1253 = vmatpush.msra.mxu0 0.0
        %1254 = vmatpush.msra.mxu0 0.0
        %1255 = vmatpush.msra.mxu0 0.0
        %1256 = vmatpush.msra.mxu0 0.0
        %1257 = vmatpush.msra.mxu0 0.0
        %1258 = vmatpush.msra.mxu0 0.0
        %1259 = vmatpush.msra.mxu0 0.0
        %1260 = vmatpush.msra.mxu0 0.0
        %1261 = vmatpush.msra.mxu0 0.0
        %1262 = vmatpush.msra.mxu0 0.0
        %1263 = vmatpush.msra.mxu0 0.0
        %1264 = vmatpush.msra.mxu0 %v1191
        %1265 = vmatpush.msra.mxu0 %v1187
        %1266 = vmatpush.msra.mxu0 %v1183
        %1267 = vmatpush.msra.mxu0 %v1179
        %1268 = vmatmul.f32.gmra.mxu0 %v1212
        %v1269 = vpop.f32.mrf.mxu0
        %v1270 = vadd.f32 %v1196, %v1269
        %1271 = vmatmul.f32.gmra.mxu0 %v1215
        %v1272 = vpop.f32.mrf.mxu0
        %v1273 = vadd.f32 %v1200, %v1272
        %1274 = vmatmul.f32.gmra.mxu0 %v1218
        %v1275 = vpop.f32.mrf.mxu0
        %v1276 = vadd.f32 %v1204, %v1275
        %1277 = vmatmul.f32.gmra.mxu0 %v1221
        %v1278 = vpop.f32.mrf.mxu0
        %v1279 = vadd.f32 %v1208, %v1278
        %1280 = vdwg.mxu0
        %1281 = vmatpush.msra.mxu0 0.0
        %1282 = vmatpush.msra.mxu0 0.0
        %1283 = vmatpush.msra.mxu0 0.0
        %1284 = vmatpush.msra.mxu0 0.0
        %1285 = vmatpush.msra.mxu0 0.0
        %1286 = vmatpush.msra.mxu0 0.0
        %1287 = vmatpush.msra.mxu0 0.0
        %1288 = vmatpush.msra.mxu0 0.0
        %1289 = vmatpush.msra.mxu0 0.0
        %1290 = vmatpush.msra.mxu0 0.0
        %1291 = vmatpush.msra.mxu0 0.0
        %1292 = vmatpush.msra.mxu0 0.0
        %1293 = vmatpush.msra.mxu0 %v1192
        %1294 = vmatpush.msra.mxu0 %v1188
        %1295 = vmatpush.msra.mxu0 %v1184
        %1296 = vmatpush.msra.mxu0 %v1180
        %1297 = vmatmul.f32.gmra.mxu0 %v1212
        %v1298 = vpop.f32.mrf.mxu0
        %v1299 = vadd.f32 %v1196, %v1298
        %1300 = vmatmul.f32.gmra.mxu0 %v1215
        %v1301 = vpop.f32.mrf.mxu0
        %v1302 = vadd.f32 %v1200, %v1301
        %1303 = vmatmul.f32.gmra.mxu0 %v1218
        %v1304 = vpop.f32.mrf.mxu0
        %v1305 = vadd.f32 %v1204, %v1304
        %1306 = vmatmul.f32.gmra.mxu0 %v1221
        %v1307 = vpop.f32.mrf.mxu0
        %v1308 = vadd.f32 %v1208, %v1307
        %1309 = vdwg.mxu0
        %1310 = vmatpush.msra.mxu0 0.0
        %1311 = vmatpush.msra.mxu0 0.0
        %1312 = vmatpush.msra.mxu0 0.0
        %1313 = vmatpush.msra.mxu0 0.0
        %1314 = vmatpush.msra.mxu0 0.0
        %1315 = vmatpush.msra.mxu0 0.0
        %1316 = vmatpush.msra.mxu0 0.0
        %1317 = vmatpush.msra.mxu0 0.0
        %1318 = vmatpush.msra.mxu0 0.0
        %1319 = vmatpush.msra.mxu0 0.0
        %1320 = vmatpush.msra.mxu0 0.0
        %1321 = vmatpush.msra.mxu0 0.0
        %1322 = vmatpush.msra.mxu0 %v1193
        %1323 = vmatpush.msra.mxu0 %v1189
        %1324 = vmatpush.msra.mxu0 %v1185
        %1325 = vmatpush.msra.mxu0 %v1181
        %1326 = vmatmul.f32.gmra.mxu0 %v1212
        %v1327 = vpop.f32.mrf.mxu0
        %v1328 = vadd.f32 %v1196, %v1327
        %1329 = vmatmul.f32.gmra.mxu0 %v1215
        %v1330 = vpop.f32.mrf.mxu0
        %v1331 = vadd.f32 %v1200, %v1330
        %1332 = vmatmul.f32.gmra.mxu0 %v1218
        %v1333 = vpop.f32.mrf.mxu0
        %v1334 = vadd.f32 %v1204, %v1333
        %1335 = vmatmul.f32.gmra.mxu0 %v1221
        %v1336 = vpop.f32.mrf.mxu0
        %v1337 = vadd.f32 %v1208, %v1336
        %1338 = vdwg.mxu0
        %v1339 = vmax.f32 %v1241, 0.0
        %v1340 = vmax.f32 %v1270, 0.0
        %v1341 = vmax.f32 %v1299, 0.0
        %v1342 = vmax.f32 %v1328, 0.0
        %v1343 = vmax.f32 %v1244, 0.0
        %v1344 = vmax.f32 %v1273, 0.0
        %v1345 = vmax.f32 %v1302, 0.0
        %v1346 = vmax.f32 %v1331, 0.0
        %v1347 = vmax.f32 %v1247, 0.0
        %v1348 = vmax.f32 %v1276, 0.0
        %v1349 = vmax.f32 %v1305, 0.0
        %v1350 = vmax.f32 %v1334, 0.0
        %v1351 = vmax.f32 %v1250, 0.0
        %v1352 = vmax.f32 %v1279, 0.0
        %v1353 = vmax.f32 %v1308, 0.0
        %v1354 = vmax.f32 %v1337, 0.0
        %1355 = vset.pattern.permute.xlu0 2
        %1356 = vperm.xlu0 %1355, %v1137
        %v1357 = vpop.permute.xlu0 %1356
        %1359 = vset.pattern.permute.xlu0 2
        %1360 = vperm.xlu0 %1359, %v1138
        %v1361 = vpop.permute.xlu0 %1360
        %1363 = vset.pattern.permute.xlu0 2
        %1364 = vperm.xlu0 %1363, %v1139
        %v1365 = vpop.permute.xlu0 %1364
        %1367 = vset.pattern.permute.xlu0 2
        %1368 = vperm.xlu0 %1367, %v1140
        %v1369 = vpop.permute.xlu0 %1368
        %v1371 = vmul.f32 %v1339, %v1357
        %v1372 = vmul.f32 %v1340, %v1357
        %v1373 = vmul.f32 %v1341, %v1357
        %v1374 = vmul.f32 %v1342, %v1357
        %v1375 = vmul.f32 %v1343, %v1361
        %v1376 = vmul.f32 %v1344, %v1361
        %v1377 = vmul.f32 %v1345, %v1361
        %v1378 = vmul.f32 %v1346, %v1361
        %v1379 = vmul.f32 %v1347, %v1365
        %v1380 = vmul.f32 %v1348, %v1365
        %v1381 = vmul.f32 %v1349, %v1365
        %v1382 = vmul.f32 %v1350, %v1365
        %v1383 = vmul.f32 %v1351, %v1369
        %v1384 = vmul.f32 %v1352, %v1369
        %v1385 = vmul.f32 %v1353, %v1369
        %v1386 = vmul.f32 %v1354, %v1369
        %v1387 = vadd.f32 %v1371, %v1375
        %v1388 = vadd.f32 %v1387, %v1379
        %v1389 = vadd.f32 %v1388, %v1383
        %v1390 = vrot.slane %v1389, 4
        %v1391 = vadd.f32 %v1389, %v1390
        %v1392 = vrot.slane %v1391, 2
        %v1393 = vadd.f32 %v1391, %v1392
        %v1394 = vrot.slane %v1393, 1
        %v1395 = vadd.f32 %v1393, %v1394
        %v1396 = vadd.f32 %v1372, %v1376
        %v1397 = vadd.f32 %v1396, %v1380
        %v1398 = vadd.f32 %v1397, %v1384
        %v1399 = vrot.slane %v1398, 4
        %v1400 = vadd.f32 %v1398, %v1399
        %v1401 = vrot.slane %v1400, 2
        %v1402 = vadd.f32 %v1400, %v1401
        %v1403 = vrot.slane %v1402, 1
        %v1404 = vadd.f32 %v1402, %v1403
        %v1405 = vadd.f32 %v1373, %v1377
        %v1406 = vadd.f32 %v1405, %v1381
        %v1407 = vadd.f32 %v1406, %v1385
        %v1408 = vrot.slane %v1407, 4
        %v1409 = vadd.f32 %v1407, %v1408
        %v1410 = vrot.slane %v1409, 2
        %v1411 = vadd.f32 %v1409, %v1410
        %v1412 = vrot.slane %v1411, 1
        %v1413 = vadd.f32 %v1411, %v1412
        %v1414 = vadd.f32 %v1374, %v1378
        %v1415 = vadd.f32 %v1414, %v1382
        %v1416 = vadd.f32 %v1415, %v1386
        %v1417 = vrot.slane %v1416, 4
        %v1418 = vadd.f32 %v1416, %v1417
        %v1419 = vrot.slane %v1418, 2
        %v1420 = vadd.f32 %v1418, %v1419
        %v1421 = vrot.slane %v1420, 1
        %v1422 = vadd.f32 %v1420, %v1421
        %1424 = vset.pattern.permute.xlu0 3
        %1425 = vperm.xlu0 %1424, %v1141
        %v1426 = vpop.permute.xlu0 %1425
        %v1428 = vadd.f32 %v1395, %v1426
        %v1429 = vadd.f32 %v1404, %v1426
        %v1430 = vadd.f32 %v1413, %v1426
        %v1431 = vadd.f32 %v1422, %v1426
        %v1432 = vxor.u32 %v1428, 2147483648
        %v1433 = vxor.u32 %v1429, 2147483648
        %v1434 = vxor.u32 %v1430, 2147483648
        %v1435 = vxor.u32 %v1431, 2147483648
        %v1436 = vmul.f32 %v1432, 1.442695
        %v1437 = vpow.pop %v1436
        %v1438 = vmul.f32 %v1433, 1.442695
        %v1439 = vpow.pop %v1438
        %v1440 = vmul.f32 %v1434, 1.442695
        %v1441 = vpow.pop %v1440
        %v1442 = vmul.f32 %v1435, 1.442695
        %v1443 = vpow.pop %v1442
        %v1444 = vadd.f32 %v1437, 1.0
        %v1445 = vadd.f32 %v1439, 1.0
        %v1446 = vadd.f32 %v1441, 1.0
        %v1447 = vadd.f32 %v1443, 1.0
        %v1448 = vrcp.pop %v1444
        %v1449 = vmul.f32 %v1444, %v1448
        %v1450 = vsub.f32 1.0, %v1449
        %v1451 = vmul.f32 %v1448, %v1450
        %v1452 = vadd.f32 %v1448, %v1451
        %vm1453 = vweird.f32 %v1444
        %vm1454 = vweird.f32 %v1448
        %vm1455 = vmor %vm1453, %vm1454
        %v1456 = vsel %vm1455, %v1448, %v1452
        %v1457 = vand.u32 2147483647, %v1444
        %vm1458 = vcmp.eq.f32.partialorder %v1457, 8.507059e+37
        %v1459 = vand.u32 %v1444, 2147483648
        %v1460 = vor.u32 1.1754944e-38, %v1459
        %v1461 = vsel %vm1458, %v1460, %v1456
        %v1462 = vmul.f32 1.0, %v1461
        %v1463 = vrcp.pop %v1445
        %v1464 = vmul.f32 %v1445, %v1463
        %v1465 = vsub.f32 1.0, %v1464
        %v1466 = vmul.f32 %v1463, %v1465
        %v1467 = vadd.f32 %v1463, %v1466
        %vm1468 = vweird.f32 %v1445
        %vm1469 = vweird.f32 %v1463
        %vm1470 = vmor %vm1468, %vm1469
        %v1471 = vsel %vm1470, %v1463, %v1467
        %v1472 = vand.u32 2147483647, %v1445
        %vm1473 = vcmp.eq.f32.partialorder %v1472, 8.507059e+37
        %v1474 = vand.u32 %v1445, 2147483648
        %v1475 = vor.u32 1.1754944e-38, %v1474
        %v1476 = vsel %vm1473, %v1475, %v1471
        %v1477 = vmul.f32 1.0, %v1476
        %v1478 = vrcp.pop %v1446
        %v1479 = vmul.f32 %v1446, %v1478
        %v1480 = vsub.f32 1.0, %v1479
        %v1481 = vmul.f32 %v1478, %v1480
        %v1482 = vadd.f32 %v1478, %v1481
        %vm1483 = vweird.f32 %v1446
        %vm1484 = vweird.f32 %v1478
        %vm1485 = vmor %vm1483, %vm1484
        %v1486 = vsel %vm1485, %v1478, %v1482
        %v1487 = vand.u32 2147483647, %v1446
        %vm1488 = vcmp.eq.f32.partialorder %v1487, 8.507059e+37
        %v1489 = vand.u32 %v1446, 2147483648
        %v1490 = vor.u32 1.1754944e-38, %v1489
        %v1491 = vsel %vm1488, %v1490, %v1486
        %v1492 = vmul.f32 1.0, %v1491
        %v1493 = vrcp.pop %v1447
        %v1494 = vmul.f32 %v1447, %v1493
        %v1495 = vsub.f32 1.0, %v1494
        %v1496 = vmul.f32 %v1493, %v1495
        %v1497 = vadd.f32 %v1493, %v1496
        %vm1498 = vweird.f32 %v1447
        %vm1499 = vweird.f32 %v1493
        %vm1500 = vmor %vm1498, %vm1499
        %v1501 = vsel %vm1500, %v1493, %v1497
        %v1502 = vand.u32 2147483647, %v1447
        %vm1503 = vcmp.eq.f32.partialorder %v1502, 8.507059e+37
        %v1504 = vand.u32 %v1447, 2147483648
        %v1505 = vor.u32 1.1754944e-38, %v1504
        %v1506 = vsel %vm1503, %v1505, %v1501
        %v1507 = vmul.f32 1.0, %v1506
        %v1512 = vrot.slane %v1477, 7
        %v1513 = vrot.slane %v1492, 6
        %v1514 = vrot.slane %v1507, 5
        %vm1515 = vcmask 1040384
        %v1516 = vsel %vm1515, %v1462, %v1512
        %vm1517 = vcmask 1042434
        %v1518 = vsel %vm1517, %v1513, %v1514
        %vm1519 = vcmask 1041408
        %v1520 = vsel %vm1519, %v1516, %v1518
        %v1522 = vlaneseq
        %vm1523 = vcmp.ge.s32.totalorder %v1522, 0
        %vm1524 = vcmp.lt.s32.totalorder %v1522, 512
        %vm1525 = vmand %vm1523, %vm1524
        %1526 = vst.msk [vmem:[%s137] sm:$0xf] %vm1525, %v1520
        %s1527 = sand.u32 %s71, 1
        %s1528 = scalar_lea.sflag [#allocation3], %s1527
        %s1529 = sand.u32 %s71, 1
        %s1530 = smul.addr %s1529, 4
        %s1531 = scalar_lea.vmem [#allocation2], %s1530
        // Predicated region
        $region29: #{fnn_forward.1} parent=27 // pred_check
          %p1532 = pneg %p81
        $region30: #{fnn_forward.1} parent=27 // pred_check_branch
          %1534 = sbr.rel (%p1532) target = $region32
        $region31: #{fnn_forward.1} parent=27 // pred_region
          %s1535 = smul.u32 4, %s16
          %1537 = vsyncadd %s1528, 0
          %s1538 = scalar_lea.hbm %s2, %s1535
          %s1540 = sshll.u32 %s1531, 4
          %s1541 = int_to_ptr.vmem [resolvable:$true] %s1540
          %s1542 = sshll.u32 %s1538, 4
          %s1543 = int_to_ptr.hbm [resolvable:$true] %s1542
          %1545 = dma.vmem_to_hbm [thread:$0]  %s1541, 64, %s1543, %s1528
        $region32: #{fnn_forward.1} parent=27 // pred_fallthru
          _
      $region28: #{fnn_forward.1} parent=5 // pred_fallthru
        _
      %p1546 = scmp.le.s32.totalorder 2, %s11
      // Predicated region
      $region33: #{fnn_forward.1} parent=5 // pred_check
        %p1547 = pneg %p1546
      $region34: #{fnn_forward.1} parent=5 // pred_check_branch
        %1549 = sbr.rel (%p1547) target = $region36
      $region35: #{fnn_forward.1} parent=5 // pred_region
        %s1550 = ssub.s32 %s11, 2
        // Predicated region
        $region37: #{fnn_forward.1} parent=35 // pred_check
          %p1551 = pneg %p87
        $region38: #{fnn_forward.1} parent=35 // pred_check_branch
          %1553 = sbr.rel (%p1551) target = $region40
        $region39: #{fnn_forward.1} parent=35 // pred_region
          %s1554 = sand.u32 %s72, 1
          %s1555 = scalar_lea.sflag [#allocation3], %s1554
          %s1556 = sand.u32 %s72, 1
          %s1557 = smul.addr %s1556, 4
          %s1558 = scalar_lea.vmem [#allocation2], %s1557
          %1560 = dma.done %s1555, 64
        $region40: #{fnn_forward.1} parent=35 // pred_fallthru
          _
      $region36: #{fnn_forward.1} parent=5 // pred_fallthru
        _
    $region6: #{fnn_forward.1} parent=1 // loop_footer
      %s15 = sadd.s32 1, %s11
    $region7: #{fnn_forward.1} parent=1 // loop_footer_branch
      %10 = sbr.rel target = $region3
    $region8: #{fnn_forward.1} parent=1 // loop_exit
      _
    %1561 = vsyncpa [#allocation3], 1
    %s1562 = scalar_lea.sflag [#allocation3], 1
    %1563 = vsyncpa %s1562, 1

</llo_original>
